<compile_context>
chip_gen: v7x
topology: tpu7x:2x2x1
jax: 0.10.0
libtpu: 0.0.40
codegen_flags: <defaults>
</compile_context>

<pallas_src>
import functools

import jax
import jax.numpy as jnp
from jax import lax
from jax.experimental import pallas as pl
from jax.experimental.pallas import tpu as pltpu


# ----------------------------------------------------------------------------
# Per-generation VMEM / tile budget
# ----------------------------------------------------------------------------

def _tpu_budget():
    try:
        vmem = pltpu.get_tpu_info().vmem_capacity_bytes
    except Exception:
        vmem = 64 * 1024 * 1024  # be conservative (v7x-sized) if the query fails
    if vmem >= 96 * 1024 * 1024:
        # v5e / v6e: 128 MiB physical VMEM -> big tiles, high limit
        return dict(vmem_limit=100 * 1024 * 1024, row_cap=512,
                    inner_targets=(2048, 1024, 512, 256, 128))
    # v7x: 64 MiB physical VMEM -> conservative tiles
    return dict(vmem_limit=48 * 1024 * 1024, row_cap=256,
                inner_targets=(512, 256, 128))


_BUDGET = _tpu_budget()


def _row_tile(m, cap=None):
    """Largest power-of-two row tile <= cap that divides m (else whole m)."""
    t = _BUDGET["row_cap"] if cap is None else cap
    while t >= 8:
        if m % t == 0:
            return t
        t //= 2
    return m


def _inner_tile(i):
    """Tile for the MLP intermediate dim: multiple of 128 dividing i, else whole i."""
    for t in _BUDGET["inner_targets"]:
        if i % t == 0:
            return t
    return i


# ----------------------------------------------------------------------------
# Constant-index weight BlockSpecs: single-buffer them (halves resident VMEM).
# Fallback to default double buffering if pipeline_mode is unsupported.
# ----------------------------------------------------------------------------

def _single_buffered(shape, index_map):
    return pl.BlockSpec(shape, index_map, pipeline_mode=pl.Buffered(1))


def _default_buffered(shape, index_map):
    return pl.BlockSpec(shape, index_map)


def _with_weight_spec(build_and_run):
    """build_and_run(weight_spec_fn) -> result; prefer single-buffered weights."""
    try:
        return build_and_run(_single_buffered)
    except Exception:
        return build_and_run(_default_buffered)


# ----------------------------------------------------------------------------
# Kernel 1: RMSNorm + fused QKV projection (one dot) + rotary embedding
# ----------------------------------------------------------------------------

def _rope_flat(t, cos, sin, n_heads, head_dim):
    """Rotary embedding on the flat [rows, n_heads*head_dim] layout.

    rotate_half is built from two wrap-around lane shifts + one per-lane select,
    so the relayout cost is independent of the number of heads.
    """
    half = head_dim // 2
    n = n_heads * head_dim
    lane = lax.broadcasted_iota(jnp.int32, (1, n), 1) % head_dim
    first = lane < half
    # shift-left-by-half (valid on the first half of every head)
    left = jnp.concatenate([t[:, half:], t[:, :half]], axis=-1)
    # shift-right-by-half (valid on the second half of every head)
    right = jnp.concatenate([t[:, n - half:], t[:, :n - half]], axis=-1)
    rot = jnp.where(first, -left, right)
    cos_f = jnp.concatenate([cos] * n_heads, axis=-1)
    sin_f = jnp.concatenate([sin] * n_heads, axis=-1)
    return t * cos_f + rot * sin_f


def _rmsnorm_qkv_rope_kernel(x_ref, ln_ref, wqkv_ref, cos_ref, sin_ref,
                             qpre_ref, kpre_ref, v_ref, qrot_ref, krot_ref,
                             *, eps, num_heads, num_kv_heads, head_dim, nq, nk):
    x = x_ref[...].astype(jnp.float32)
    var = jnp.mean(x * x, axis=-1, keepdims=True)
    h = x * lax.rsqrt(var + eps) * (1.0 + ln_ref[...].astype(jnp.float32))
    hb = h.astype(jnp.bfloat16)

    # One MXU pass over the concatenated [H, Nq+2*Nk] bf16 weight.
    y = jnp.dot(hb, wqkv_ref[...], preferred_element_type=jnp.float32)
    q = y[:, :nq]
    k = y[:, nq:nq + nk]
    v = y[:, nq + nk:]

    # Pre-rotary q/k and projected v are what the reference exposes for mix attention.
    qpre_ref[...] = q.astype(qpre_ref.dtype)
    kpre_ref[...] = k.astype(kpre_ref.dtype)
    v_ref[...] = v.astype(v_ref.dtype)

    cos = cos_ref[...].astype(jnp.float32)
    sin = sin_ref[...].astype(jnp.float32)
    qrot_ref[...] = _rope_flat(q, cos, sin, num_heads, head_dim).astype(qrot_ref.dtype)
    krot_ref[...] = _rope_flat(k, cos, sin, num_kv_heads, head_dim).astype(krot_ref.dtype)


def fused_rmsnorm_qkv_rope(x, ln_w, wqkv, cos, sin,
                           num_heads, num_kv_heads, head_dim, eps=1e-6):
    """x: [M, H] fp32 -> bf16 (q_pre, k_pre, v, q_rot, k_rot)."""
    M, H = x.shape
    Nq = num_heads * head_dim
    Nk = num_kv_heads * head_dim
    Nqkv = Nq + 2 * Nk
    assert wqkv.shape == (H, Nqkv)
    D = head_dim
    tm = _row_tile(M)
    kernel = functools.partial(
        _rmsnorm_qkv_rope_kernel, eps=eps, num_heads=num_heads,
        num_kv_heads=num_kv_heads, head_dim=head_dim, nq=Nq, nk=Nk)
    out_dt = jnp.bfloat16  # bf16 intermediates between kernels; residual stream stays fp32

    def run(weight_spec):
        return pl.pallas_call(
            kernel,
            out_shape=(
                jax.ShapeDtypeStruct((M, Nq), out_dt),   # q_pre
                jax.ShapeDtypeStruct((M, Nk), out_dt),   # k_pre
                jax.ShapeDtypeStruct((M, Nk), out_dt),   # v
                jax.ShapeDtypeStruct((M, Nq), out_dt),   # q_rot
                jax.ShapeDtypeStruct((M, Nk), out_dt),   # k_rot
            ),
            grid=(M // tm,),
            in_specs=[
                pl.BlockSpec((tm, H), lambda i: (i, 0)),
                pl.BlockSpec((1, H), lambda i: (0, 0)),
                weight_spec((H, Nqkv), lambda i: (0, 0)),  # constant-index weight
                pl.BlockSpec((tm, D), lambda i: (i, 0)),
                pl.BlockSpec((tm, D), lambda i: (i, 0)),
            ],
            out_specs=(
                pl.BlockSpec((tm, Nq), lambda i: (i, 0)),
                pl.BlockSpec((tm, Nk), lambda i: (i, 0)),
                pl.BlockSpec((tm, Nk), lambda i: (i, 0)),
                pl.BlockSpec((tm, Nq), lambda i: (i, 0)),
                pl.BlockSpec((tm, Nk), lambda i: (i, 0)),
            ),
            compiler_params=pltpu.CompilerParams(
                dimension_semantics=("parallel",),
                vmem_limit_bytes=_BUDGET["vmem_limit"]),
        )(x, ln_w.reshape(1, H), wqkv, cos, sin)

    return _with_weight_spec(run)


# ----------------------------------------------------------------------------
# Kernel 2: multi-head softmax attention on token-major [B, S, nH*D] layout
# ----------------------------------------------------------------------------

def _softmax_matmul_v(s, v, out_dtype):
    s = s - jnp.max(s, axis=-1, keepdims=True)
    p = jnp.exp(s)
    denom = jnp.sum(p, axis=-1, keepdims=True)
    o = jnp.dot(p.astype(jnp.bfloat16), v, preferred_element_type=jnp.float32)
    return (o * pl.reciprocal(denom, approx=True)).astype(out_dtype)


# -- path A: one head per grid step (lane-aligned head_dim, megacore-friendly) --

def _attn_head_kernel(q_ref, k_ref, v_ref, o_ref, *, scale):
    q = (q_ref[0].astype(jnp.float32) * scale).astype(jnp.bfloat16)  # scale folded into q
    k = k_ref[0].astype(jnp.bfloat16)
    v = v_ref[0].astype(jnp.bfloat16)
    s = lax.dot_general(q, k, (((1,), (1,)), ((), ())), preferred_element_type=jnp.float32)
    o_ref[0] = _softmax_matmul_v(s, v, o_ref.dtype)


def _attn_head_bias_kernel(q_ref, k_ref, v_ref, b_ref, o_ref, *, scale):
    q = (q_ref[0].astype(jnp.float32) * scale).astype(jnp.bfloat16)
    k = k_ref[0].astype(jnp.bfloat16)
    v = v_ref[0].astype(jnp.bfloat16)
    s = lax.dot_general(q, k, (((1,), (1,)), ((), ())), preferred_element_type=jnp.float32)
    s = s + b_ref[0].astype(jnp.float32)   # head-broadcast bias, compact [Sq, Sk]
    o_ref[0] = _softmax_matmul_v(s, v, o_ref.dtype)


def _attention_head_grid(q, k, v, bias, num_heads, num_kv_heads, head_dim, scale):
    B, Sq, _ = q.shape
    _, Sk, _ = k.shape
    groups = num_heads // num_kv_heads
    q_spec = pl.BlockSpec((1, Sq, head_dim), lambda b, h: (b, 0, h))
    kv_spec = pl.BlockSpec((1, Sk, head_dim), lambda b, h: (b, 0, h // groups))  # GQA
    o_spec = pl.BlockSpec((1, Sq, head_dim), lambda b, h: (b, 0, h))
    if bias is None:
        kernel = functools.partial(_attn_head_kernel, scale=scale)
        in_specs = [q_spec, kv_spec, kv_spec]
        args = (q, k, v)
    else:
        kernel = functools.partial(_attn_head_bias_kernel, scale=scale)
        in_specs = [q_spec, kv_spec, kv_spec,
                    pl.BlockSpec((1, Sq, Sk), lambda b, h: (b, 0, 0))]
        args = (q, k, v, bias)
    # TODO: tile Sk with an online-softmax accumulator for very long mix sequences.
    return pl.pallas_call(
        kernel,
        out_shape=jax.ShapeDtypeStruct((B, Sq, num_heads * head_dim), q.dtype),
        grid=(B, num_heads),
        in_specs=in_specs,
        out_specs=o_spec,
        compiler_params=pltpu.CompilerParams(
            dimension_semantics=("parallel", "parallel"),
            vmem_limit_bytes=_BUDGET["vmem_limit"]),
    )(*args)


# -- path B: fallback for small / unaligned head_dim (in-kernel head loop) --

def _attn_all_heads(q, k, v, bias, o_ref, num_heads, num_kv_heads, head_dim, scale):
    groups = num_heads // num_kv_heads
    for h in range(num_heads):
        qh = (q[:, h * head_dim:(h + 1) * head_dim].astype(jnp.float32)
              * scale).astype(jnp.bfloat16)
        g = h // groups  # GQA / repeat_kv by slicing the kv head, no materialized copies
        kh = k[:, g * head_dim:(g + 1) * head_dim].astype(jnp.bfloat16)
        vh = v[:, g * head_dim:(g + 1) * head_dim].astype(jnp.bfloat16)
        s = lax.dot_general(qh, kh, (((1,), (1,)), ((), ())),
                            preferred_element_type=jnp.float32)
        if bias is not None:
            s = s + bias
        # Store each head's result directly into its output slice (no concatenate).
        o_ref[0, :, h * head_dim:(h + 1) * head_dim] = _softmax_matmul_v(s, vh, o_ref.dtype)


def _attn_batch_kernel(q_ref, k_ref, v_ref, o_ref, **kw):
    _attn_all_heads(q_ref[0], k_ref[0], v_ref[0], None, o_ref, **kw)


def _attn_batch_bias_kernel(q_ref, k_ref, v_ref, b_ref, o_ref, **kw):
    _attn_all_heads(q_ref[0], k_ref[0], v_ref[0], b_ref[0].astype(jnp.float32), o_ref, **kw)


def _attention_batch_grid(q, k, v, bias, num_heads, num_kv_heads, head_dim, scale):
    B, Sq, Nq = q.shape
    _, Sk, Nk = k.shape
    common = dict(num_heads=num_heads, num_kv_heads=num_kv_heads,
                  head_dim=head_dim, scale=scale)
    q_spec = pl.BlockSpec((1, Sq, Nq), lambda b: (b, 0, 0))
    kv_spec = pl.BlockSpec((1, Sk, Nk), lambda b: (b, 0, 0))
    o_spec = pl.BlockSpec((1, Sq, Nq), lambda b: (b, 0, 0))
    if bias is None:
        kernel = functools.partial(_attn_batch_kernel, **common)
        in_specs = [q_spec, kv_spec, kv_spec]
        args = (q, k, v)
    else:
        kernel = functools.partial(_attn_batch_bias_kernel, **common)
        in_specs = [q_spec, kv_spec, kv_spec,
                    pl.BlockSpec((1, Sq, Sk), lambda b: (b, 0, 0))]
        args = (q, k, v, bias)
    return pl.pallas_call(
        kernel,
        out_shape=jax.ShapeDtypeStruct((B, Sq, Nq), q.dtype),
        grid=(B,),
        in_specs=in_specs,
        out_specs=o_spec,
        compiler_params=pltpu.CompilerParams(
            dimension_semantics=("parallel",),
            vmem_limit_bytes=_BUDGET["vmem_limit"]),
    )(*args)


def _compact_bias(bias, B, Sq, Sk):
    """Normalize an additive attention bias to compact [B, Sq, Sk] fp32 (no head axis)."""
    b = jnp.asarray(bias, jnp.float32)
    if b.ndim == 4:
        # TODO(synk): per-head additive biases are not supported compactly; the
        # reference only ever passes head-broadcast masks ([B, 1, Sq, Sk]).
        assert b.shape[1] == 1, "per-head attention bias not supported"
        b = b[:, 0]
    elif b.ndim == 2:
        b = b[None]
    return jnp.broadcast_to(b, (B, Sq, Sk))


def pallas_attention(q, k, v, num_heads, num_kv_heads, head_dim, scale, bias=None):
    """q: [B, Sq, nH*D]; k,v: [B, Sk, nKV*D]; bias broadcastable over heads."""
    B, Sq, Nq = q.shape
    _, Sk, Nk = k.shape
    assert Nq == num_heads * head_dim and Nk == num_kv_heads * head_dim
    bias_c = None if bias is None else _compact_bias(bias, B, Sq, Sk)
    if head_dim % 128 == 0:
        return _attention_head_grid(q, k, v, bias_c, num_heads, num_kv_heads,
                                    head_dim, scale)
    return _attention_batch_grid(q, k, v, bias_c, num_heads, num_kv_heads,
                                 head_dim, scale)


# ----------------------------------------------------------------------------
# Kernel 3: projection + residual add (used for o_proj and mix o_proj)
# ----------------------------------------------------------------------------

def _matmul_residual_kernel(x_ref, w_ref, r_ref, o_ref):
    y = jnp.dot(x_ref[...].astype(jnp.bfloat16), w_ref[...],
                preferred_element_type=jnp.float32)
    o_ref[...] = (r_ref[...].astype(jnp.float32) + y).astype(o_ref.dtype)


def matmul_residual(x, w, residual):
    """residual + x @ w.  x: [M, K] (bf16), w: [K, N] (bf16), residual: [M, N] (fp32)."""
    M, K = x.shape
    N = w.shape[1]
    tm = _row_tile(M)

    def run(weight_spec):
        return pl.pallas_call(
            _matmul_residual_kernel,
            out_shape=jax.ShapeDtypeStruct((M, N), residual.dtype),
            grid=(M // tm,),
            in_specs=[
                pl.BlockSpec((tm, K), lambda i: (i, 0)),
                weight_spec((K, N), lambda i: (0, 0)),   # constant-index weight
                pl.BlockSpec((tm, N), lambda i: (i, 0)),
            ],
            out_specs=pl.BlockSpec((tm, N), lambda i: (i, 0)),
            compiler_params=pltpu.CompilerParams(
                dimension_semantics=("parallel",),
                vmem_limit_bytes=_BUDGET["vmem_limit"]),
        )(x, w, residual)

    return _with_weight_spec(run)


# ----------------------------------------------------------------------------
# Kernel 4: post-attention RMSNorm + Gemma MLP + residual (I-tiled accumulation)
# ----------------------------------------------------------------------------

def _rmsnorm_mlp_residual_kernel(x_ref, ln_ref, wg_ref, wu_ref, wd_ref, o_ref,
                                 h_scratch, acc_ref, *, eps):
    it = pl.program_id(1)

    @pl.when(it == 0)
    def _():
        x = x_ref[...].astype(jnp.float32)
        var = jnp.mean(x * x, axis=-1, keepdims=True)
        h = x * lax.rsqrt(var + eps) * (1.0 + ln_ref[...].astype(jnp.float32))
        h_scratch[...] = h.astype(jnp.bfloat16)
        acc_ref[...] = jnp.zeros_like(acc_ref)

    h = h_scratch[...]
    g = jnp.dot(h, wg_ref[...], preferred_element_type=jnp.float32)
    u = jnp.dot(h, wu_ref[...], preferred_element_type=jnp.float32)
    a = (jax.nn.gelu(g, approximate=True) * u).astype(jnp.bfloat16)  # gelu_pytorch_tanh
    acc_ref[...] += jnp.dot(a, wd_ref[...], preferred_element_type=jnp.float32)

    @pl.when(it == pl.num_programs(1) - 1)
    def _():
        o_ref[...] = (x_ref[...].astype(jnp.float32) + acc_ref[...]).astype(o_ref.dtype)


def rmsnorm_mlp_residual(x, ln_w, wg, wu, wd, eps=1e-6):
    """x + down(gelu_tanh(gate(rmsnorm(x))) * up(rmsnorm(x))).  x: [M, H] fp32."""
    M, H = x.shape
    I = wg.shape[1]
    tm = _row_tile(M)
    ti = _inner_tile(I)
    return pl.pallas_call(
        functools.partial(_rmsnorm_mlp_residual_kernel, eps=eps),
        out_shape=jax.ShapeDtypeStruct((M, H), x.dtype),
        grid=(M // tm, I // ti),
        in_specs=[
            pl.BlockSpec((tm, H), lambda m, i: (m, 0)),
            pl.BlockSpec((1, H), lambda m, i: (0, 0)),
            pl.BlockSpec((H, ti), lambda m, i: (0, i)),
            pl.BlockSpec((H, ti), lambda m, i: (0, i)),
            pl.BlockSpec((ti, H), lambda m, i: (i, 0)),
        ],
        out_specs=pl.BlockSpec((tm, H), lambda m, i: (m, 0)),
        scratch_shapes=[
            pltpu.VMEM((tm, H), jnp.bfloat16),   # normed activations (dot operand)
            pltpu.VMEM((tm, H), jnp.float32),    # fp32 accumulator over the I axis
        ],
        compiler_params=pltpu.CompilerParams(
            dimension_semantics=("parallel", "arbitrary"),
            vmem_limit_bytes=_BUDGET["vmem_limit"]),
    )(x, ln_w.reshape(1, H), wg, wu, wd)


# ----------------------------------------------------------------------------
# Kernel 5: final nn.LayerNorm (row-tiled)
# ----------------------------------------------------------------------------

def _layernorm_kernel(x_ref, w_ref, b_ref, o_ref, *, eps):
    x = x_ref[...].astype(jnp.float32)
    mean = jnp.mean(x, axis=-1, keepdims=True)
    xc = x - mean
    var = jnp.mean(xc * xc, axis=-1, keepdims=True)
    y = xc * lax.rsqrt(var + eps)
    o_ref[...] = (y * w_ref[...].astype(jnp.float32)
                  + b_ref[...].astype(jnp.float32)).astype(o_ref.dtype)


def layernorm(x, w, b, eps=1e-5):
    lead = x.shape[:-1]
    xm = x.reshape(-1, x.shape[-1])
    M, H = xm.shape
    tm = _row_tile(M)
    out = pl.pallas_call(
        functools.partial(_layernorm_kernel, eps=eps),
        out_shape=jax.ShapeDtypeStruct((M, H), x.dtype),
        grid=(M // tm,),
        in_specs=[
            pl.BlockSpec((tm, H), lambda i: (i, 0)),
            pl.BlockSpec((1, H), lambda i: (0, 0)),
            pl.BlockSpec((1, H), lambda i: (0, 0)),
        ],
        out_specs=pl.BlockSpec((tm, H), lambda i: (i, 0)),
        compiler_params=pltpu.CompilerParams(dimension_semantics=("parallel",)),
    )(xm, w.reshape(1, H), b.reshape(1, H))
    return out.reshape(*lead, H)


# ----------------------------------------------------------------------------
# Plain-JAX glue: weight prep, rotary tables, module orchestration
# ----------------------------------------------------------------------------

def prepare_params(params):
    """One-time (per forward, outside the kernels) weight preparation:
    projection weights cast to bf16 and q/k/v concatenated into one matrix;
    norm weights stay fp32 (VPU math is fp32)."""
    prepared = {"layers": [], "final_norms": params["final_norms"]}
    for lp in params["layers"]:
        new_lp = {}
        for name, p in lp.items():
            new_lp[name] = {
                "input_ln": p["input_ln"].astype(jnp.float32),
                "wqkv": jnp.concatenate(
                    [p["q_proj"], p["k_proj"], p["v_proj"]], axis=1).astype(jnp.bfloat16),
                "o_proj": p["o_proj"].astype(jnp.bfloat16),
                "post_ln": p["post_ln"].astype(jnp.float32),
                "gate_proj": p["gate_proj"].astype(jnp.bfloat16),
                "up_proj": p["up_proj"].astype(jnp.bfloat16),
                "down_proj": p["down_proj"].astype(jnp.bfloat16),
            }
        prepared["layers"].append(new_lp)
    return prepared


def rotary_embedding(position_ids, head_dim, theta=10000.0):
    """GemmaRotaryEmbedding: cos/sin of shape [B, S, head_dim]."""
    inv_freq = 1.0 / (
        theta ** (jnp.arange(0, head_dim, 2, dtype=jnp.float32) / head_dim)
    )
    freqs = position_ids[..., None].astype(jnp.float32) * inv_freq[None, None, :]
    emb = jnp.concatenate([freqs, freqs], axis=-1)
    return jnp.cos(emb), jnp.sin(emb)


def expert_decoder_forward(p, x, cos, sin, cfg, attn_mask=None):
    """One GemmaDecoderLayer (with CustomGemmaAttention).

    Returns (hidden_states fp32, (pre-rotary q, pre-rotary k, v) bf16) in token-major
    [B, S, heads*head_dim] layout — exactly the states the reference exposes for
    mix attention (before repeat_kv, pre-rotary for q/k).
    """
    B, S, H = x.shape
    nH = cfg["num_attention_heads"]
    nKV = cfg["num_key_value_heads"]
    D = cfg["head_dim"]
    M = B * S

    xm = x.reshape(M, H)
    cosm = cos.reshape(M, D).astype(jnp.float32)
    sinm = sin.reshape(M, D).astype(jnp.float32)

    q_pre, k_pre, v, q_rot, k_rot = fused_rmsnorm_qkv_rope(
        xm, p["input_ln"], p["wqkv"], cosm, sinm, nH, nKV, D)

    attn = pallas_attention(
        q_rot.reshape(B, S, nH * D),
        k_rot.reshape(B, S, nKV * D),
        v.reshape(B, S, nKV * D),
        nH, nKV, D, scale=D ** -0.5, bias=attn_mask)

    # o_proj + residual, then post-norm + MLP + residual (both fused kernels).
    x1 = matmul_residual(attn.reshape(M, nH * D), p["o_proj"], xm)
    x2 = rmsnorm_mlp_residual(x1, p["post_ln"], p["gate_proj"], p["up_proj"], p["down_proj"])

    return x2.reshape(B, S, H), (
        q_pre.reshape(B, S, nH * D),
        k_pre.reshape(B, S, nKV * D),
        v.reshape(B, S, nKV * D),
    )


def moe_layer_forward(lp, hidden_states, cfgs, cos_sin,
                      expert_attention_masks=None, mix_attention_mask=None):
    names = list(hidden_states.keys())
    c0 = cfgs[names[0]]
    nH, nKV, D = c0["num_attention_heads"], c0["num_key_value_heads"], c0["head_dim"]
    for n in names:  # required by the reference's cross-expert concat on the head axis
        assert cfgs[n]["num_attention_heads"] == nH
        assert cfgs[n]["num_key_value_heads"] == nKV
        assert cfgs[n]["head_dim"] == D

    expert_outputs = {}
    qs, ks, vs, q_lens = [], [], [], []
    for name in names:
        cos, sin = cos_sin[name]
        mask = expert_attention_masks[name] if expert_attention_masks else None
        out, (q, k, v) = expert_decoder_forward(
            lp[name], hidden_states[name], cos, sin, cfgs[name], mask)
        expert_outputs[name] = out
        qs.append(q)
        ks.append(k)
        vs.append(v)
        q_lens.append(hidden_states[name].shape[1])
    # TODO(synk): experts with identical shapes could be stacked on a leading grid
    #             axis and run as one pallas_call per kernel type instead of this loop.

    # Cross-expert mix attention on pre-rotary q/k and projected v (bf16 concat on seq).
    Q = jnp.concatenate(qs, axis=1)   # [B, S_total, nH*D]  (bf16)
    K = jnp.concatenate(ks, axis=1)   # [B, S_total, nKV*D] (bf16)
    V = jnp.concatenate(vs, axis=1)
    B = Q.shape[0]

    mixed = pallas_attention(Q, K, V, nH, nKV, D, scale=D ** -0.5,
                             bias=mix_attention_mask)   # [B, S_total, nH*D] bf16

    outputs = {}
    off = 0
    for name, L in zip(names, q_lens):
        seg = mixed[:, off:off + L, :]
        off += L
        H = cfgs[name]["hidden_size"]
        y = matmul_residual(seg.reshape(B * L, nH * D), lp[name]["o_proj"],
                            expert_outputs[name].reshape(B * L, H))
        outputs[name] = y.reshape(B, L, H)
    return outputs


def gemma_moe_forward(params, hidden_states, cfgs, position_ids=None,
                      expert_attention_masks=None, mix_attention_mask=None):
    prepared = prepare_params(params)   # bf16 weights + fused qkv, once per forward

    # GemmaMoE._normalize_inputs
    normed = {
        n: s * jnp.sqrt(jnp.asarray(s.shape[-1], s.dtype))
        for n, s in hidden_states.items()
    }
    # Rotary tables (identical for every layer; depend only on position_ids).
    cos_sin = {}
    for n, s in normed.items():
        B, S, _ = s.shape
        if position_ids is not None and position_ids.get(n) is not None:
            pos = position_ids[n]
        else:
            pos = jnp.broadcast_to(jnp.arange(S, dtype=jnp.int32)[None, :], (B, S))
        cos_sin[n] = rotary_embedding(pos, cfgs[n]["head_dim"])

    x = normed
    for lp in prepared["layers"]:
        x = moe_layer_forward(
            lp, x, cfgs, cos_sin, expert_attention_masks, mix_attention_mask)

    out = {}
    for n, s in x.items():
        fn = prepared["final_norms"][n]
        out[n] = layernorm(s, fn["weight"], fn["bias"])
    return out


# ----------------------------------------------------------------------------
# Deterministic parameter init (reference-style fp32 params)
# ----------------------------------------------------------------------------

def init_params(key, depth, cfgs):
    names = list(cfgs.keys())
    params = {"layers": [], "final_norms": {}}
    for li in range(depth):
        lp = {}
        for ei, name in enumerate(names):
            c = cfgs[name]
            H, I, D = c["hidden_size"], c["intermediate_size"], c["head_dim"]
            nH, nKV = c["num_attention_heads"], c["num_key_value_heads"]
            k = jax.random.fold_in(jax.random.fold_in(key, li), ei)
            ks = jax.random.split(k, 9)
            s = 0.02
            lp[name] = {
                "input_ln": s * jax.random.normal(ks[0], (H,), jnp.float32),
                "q_proj": s * jax.random.normal(ks[1], (H, nH * D), jnp.float32),
                "k_proj": s * jax.random.normal(ks[2], (H, nKV * D), jnp.float32),
                "v_proj": s * jax.random.normal(ks[3], (H, nKV * D), jnp.float32),
                "o_proj": s * jax.random.normal(ks[4], (nH * D, H), jnp.float32),
                "post_ln": s * jax.random.normal(ks[5], (H,), jnp.float32),
                "gate_proj": s * jax.random.normal(ks[6], (H, I), jnp.float32),
                "up_proj": s * jax.random.normal(ks[7], (H, I), jnp.float32),
                "down_proj": s * jax.random.normal(ks[8], (I, H), jnp.float32),
            }
        params["layers"].append(lp)
    for ei, name in enumerate(names):
        H = cfgs[name]["hidden_size"]
        k = jax.random.fold_in(jax.random.fold_in(key, 10_000), ei)
        k1, k2 = jax.random.split(k)
        params["final_norms"][name] = {
            "weight": 1.0 + 0.02 * jax.random.normal(k1, (H,), jnp.float32),
            "bias": 0.02 * jax.random.normal(k2, (H,), jnp.float32),
        }
    return params


# ----------------------------------------------------------------------------
# Demo
# ----------------------------------------------------------------------------

if __name__ == "__main__":
    key = jax.random.PRNGKey(0)

    # Heads / head_dim must match across experts for the cross-expert concat
    # (dim=2) in mix_attention, exactly as the PyTorch module requires.
    cfgs = {
        "prefix": dict(hidden_size=32, intermediate_size=64, head_dim=16,
                       num_attention_heads=2, num_key_value_heads=2),
        "suffix": dict(hidden_size=32, intermediate_size=64, head_dim=16,
                       num_attention_heads=2, num_key_value_heads=2),
    }
    depth = 2
    B = 2
    seqs = {"prefix": 8, "suffix": 8}

    pk, xk1, xk2 = jax.random.split(key, 3)
    params = init_params(pk, depth, cfgs)
    hidden_states = {
        "prefix": jax.random.normal(xk1, (B, seqs["prefix"], 32), jnp.float32),
        "suffix": jax.random.normal(xk2, (B, seqs["suffix"], 32), jnp.float32),
    }

    out = gemma_moe_forward(params, hidden_states, cfgs)
    out = jax.tree_util.tree_map(jax.block_until_ready, out)

    for name, cfg in cfgs.items():
        assert out[name].shape == (B, seqs[name], cfg["hidden_size"])
        assert bool(jnp.all(jnp.isfinite(out[name])))

    print("KERNEL_OK")
</pallas_src>

<mosaic_0001>
module attributes {stable_mosaic.version = 11 : i64} {
  func.func @_rmsnorm_qkv_rope_kernel(%arg0: i32, %arg1: memref<16x32xf32, #tpu.memory_space<vmem>>, %arg2: memref<1x32xf32, #tpu.memory_space<vmem>>, %arg3: memref<32x96xbf16, #tpu.memory_space<vmem>>, %arg4: memref<16x16xf32, #tpu.memory_space<vmem>>, %arg5: memref<16x16xf32, #tpu.memory_space<vmem>>, %arg6: memref<16x32xbf16, #tpu.memory_space<vmem>>, %arg7: memref<16x32xbf16, #tpu.memory_space<vmem>>, %arg8: memref<16x32xbf16, #tpu.memory_space<vmem>>, %arg9: memref<16x32xbf16, #tpu.memory_space<vmem>>, %arg10: memref<16x32xbf16, #tpu.memory_space<vmem>>) attributes {dimension_semantics = [#tpu.dimension_semantics<parallel>], iteration_bounds = array<i64: 1>, scalar_prefetch = 0 : i64, scratch_operands = 0 : i64, tpu.core_type = #tpu.core_type<tc>, window_params = [{transform_indices = @transform_0, window_bounds = array<i64: 16, 32>}, {pipeline_mode = #tpu.pipeline_mode<synchronous>, transform_indices = @transform_1, window_bounds = array<i64: 1, 32>}, {pipeline_mode = #tpu.pipeline_mode<synchronous>, transform_indices = @transform_2, window_bounds = array<i64: 32, 96>}, {transform_indices = @transform_3, window_bounds = array<i64: 16, 16>}, {transform_indices = @transform_4, window_bounds = array<i64: 16, 16>}, {transform_indices = @transform_5, window_bounds = array<i64: 16, 32>}, {transform_indices = @transform_6, window_bounds = array<i64: 16, 32>}, {transform_indices = @transform_7, window_bounds = array<i64: 16, 32>}, {transform_indices = @transform_8, window_bounds = array<i64: 16, 32>}, {transform_indices = @transform_9, window_bounds = array<i64: 16, 32>}]} {
    %c0 = arith.constant 0 : index
    %c0_0 = arith.constant 0 : index
    %0 = vector.load %arg1[%c0, %c0_0] : memref<16x32xf32, #tpu.memory_space<vmem>>, vector<16x32xf32>
    %1 = arith.mulf %0, %0 : vector<16x32xf32>
    %cst = arith.constant dense<0.000000e+00> : vector<16xf32>
    %2 = vector.multi_reduction <add>, %1, %cst [1] : vector<16x32xf32> to vector<16xf32>
    %3 = vector.shape_cast %2 : vector<16xf32> to vector<16x1xf32>
    %cst_1 = arith.constant 3.200000e+01 : f32
    %4 = vector.broadcast %cst_1 : f32 to vector<16x1xf32>
    %5 = arith.divf %3, %4 : vector<16x1xf32>
    %cst_2 = arith.constant 9.99999997E-7 : f32
    %6 = vector.broadcast %cst_2 : f32 to vector<16x1xf32>
    %7 = arith.addf %5, %6 : vector<16x1xf32>
    %8 = math.rsqrt %7 : vector<16x1xf32>
    %9 = vector.broadcast %8 : vector<16x1xf32> to vector<16x32xf32>
    %10 = arith.mulf %0, %9 : vector<16x32xf32>
    %c0_3 = arith.constant 0 : index
    %c0_4 = arith.constant 0 : index
    %11 = vector.load %arg2[%c0_3, %c0_4] : memref<1x32xf32, #tpu.memory_space<vmem>>, vector<1x32xf32>
    %cst_5 = arith.constant 1.000000e+00 : f32
    %12 = vector.broadcast %cst_5 : f32 to vector<1x32xf32>
    %13 = arith.addf %12, %11 : vector<1x32xf32>
    %14 = vector.broadcast %13 : vector<1x32xf32> to vector<16x32xf32>
    %15 = arith.mulf %10, %14 : vector<16x32xf32>
    %16 = arith.truncf %15 : vector<16x32xf32> to vector<16x32xbf16>
    %c0_6 = arith.constant 0 : index
    %c0_7 = arith.constant 0 : index
    %17 = vector.load %arg3[%c0_6, %c0_7] : memref<32x96xbf16, #tpu.memory_space<vmem>>, vector<32x96xbf16>
    %cst_8 = arith.constant dense<0.000000e+00> : vector<16x96xf32>
    %18 = tpu.matmul %16, %17, %cst_8 {dimension_numbers = #tpu.dot_dimension_numbers<[1], [0], [0], [1], [0, 0, 1, 1], [], []>} : vector<16x32xbf16>, vector<32x96xbf16>, vector<16x96xf32> -> vector<16x96xf32>
    %19 = vector.extract_strided_slice %18 {offsets = [0, 0], sizes = [16, 32], strides = [1, 1]} : vector<16x96xf32> to vector<16x32xf32>
    %20 = vector.extract_strided_slice %18 {offsets = [0, 32], sizes = [16, 32], strides = [1, 1]} : vector<16x96xf32> to vector<16x32xf32>
    %21 = vector.extract_strided_slice %18 {offsets = [0, 64], sizes = [16, 32], strides = [1, 1]} : vector<16x96xf32> to vector<16x32xf32>
    %22 = arith.truncf %19 : vector<16x32xf32> to vector<16x32xbf16>
    %c0_9 = arith.constant 0 : index
    %c0_10 = arith.constant 0 : index
    %23 = vector.load %arg6[%c0_9, %c0_10] : memref<16x32xbf16, #tpu.memory_space<vmem>>, vector<16x32xbf16>
    tpu.vector_store %arg6[%c0_9, %c0_10], %22 {strides = array<i32>} : memref<16x32xbf16, #tpu.memory_space<vmem>>, vector<16x32xbf16>,
    %24 = arith.truncf %20 : vector<16x32xf32> to vector<16x32xbf16>
    %c0_11 = arith.constant 0 : index
    %c0_12 = arith.constant 0 : index
    %25 = vector.load %arg7[%c0_11, %c0_12] : memref<16x32xbf16, #tpu.memory_space<vmem>>, vector<16x32xbf16>
    tpu.vector_store %arg7[%c0_11, %c0_12], %24 {strides = array<i32>} : memref<16x32xbf16, #tpu.memory_space<vmem>>, vector<16x32xbf16>,
    %26 = arith.truncf %21 : vector<16x32xf32> to vector<16x32xbf16>
    %c0_13 = arith.constant 0 : index
    %c0_14 = arith.constant 0 : index
    %27 = vector.load %arg8[%c0_13, %c0_14] : memref<16x32xbf16, #tpu.memory_space<vmem>>, vector<16x32xbf16>
    tpu.vector_store %arg8[%c0_13, %c0_14], %26 {strides = array<i32>} : memref<16x32xbf16, #tpu.memory_space<vmem>>, vector<16x32xbf16>,
    %c0_15 = arith.constant 0 : index
    %c0_16 = arith.constant 0 : index
    %28 = vector.load %arg4[%c0_15, %c0_16] : memref<16x16xf32, #tpu.memory_space<vmem>>, vector<16x16xf32>
    %c0_17 = arith.constant 0 : index
    %c0_18 = arith.constant 0 : index
    %29 = vector.load %arg5[%c0_17, %c0_18] : memref<16x16xf32, #tpu.memory_space<vmem>>, vector<16x16xf32>
    %30 = tpu.iota {dimensions = array<i32: 1>} : vector<1x32xi32>
    %c16_i32 = arith.constant 16 : i32
    %c0_i32 = arith.constant 0 : i32
    %31 = arith.cmpi eq, %c16_i32, %c0_i32 : i32
    %c1_i32 = arith.constant 1 : i32
    %32 = arith.select %31, %c1_i32, %c16_i32 : i32
    %33 = vector.broadcast %32 : i32 to vector<1x32xi32>
    %34 = arith.remsi %30, %33 : vector<1x32xi32>
    %c0_i32_19 = arith.constant 0 : i32
    %35 = vector.broadcast %c0_i32_19 : i32 to vector<1x32xi32>
    %36 = arith.cmpi ne, %34, %35 : vector<1x32xi32>
    %c0_i32_20 = arith.constant 0 : i32
    %37 = vector.broadcast %c0_i32_20 : i32 to vector<1x32xi32>
    %38 = arith.cmpi slt, %34, %37 : vector<1x32xi32>
    %c0_i32_21 = arith.constant 0 : i32
    %39 = arith.cmpi slt, %32, %c0_i32_21 : i32
    %40 = vector.broadcast %39 : i1 to vector<1x32xi1>
    %41 = vector.broadcast %40 : vector<1x32xi1> to vector<1x32xi1>
    %42 = arith.xori %38, %41 : vector<1x32xi1>
    %43 = arith.andi %42, %36 : vector<1x32xi1>
    %44 = vector.broadcast %32 : i32 to vector<1x32xi32>
    %45 = arith.addi %34, %44 : vector<1x32xi32>
    %46 = arith.select %43, %45, %34 : vector<1x32xi1>, vector<1x32xi32>
    %c8_i32 = arith.constant 8 : i32
    %47 = vector.broadcast %c8_i32 : i32 to vector<1x32xi32>
    %48 = arith.cmpi slt, %46, %47 : vector<1x32xi32>
    %49 = vector.extract_strided_slice %19 {offsets = [0, 8], sizes = [16, 24], strides = [1, 1]} : vector<16x32xf32> to vector<16x24xf32>
    %50 = vector.extract_strided_slice %19 {offsets = [0, 0], sizes = [16, 8], strides = [1, 1]} : vector<16x32xf32> to vector<16x8xf32>
    %51 = tpu.concatenate %49, %50 in 1 : vector<16x24xf32>, vector<16x8xf32> -> vector<16x32xf32>
    %52 = vector.extract_strided_slice %19 {offsets = [0, 24], sizes = [16, 8], strides = [1, 1]} : vector<16x32xf32> to vector<16x8xf32>
    %53 = vector.extract_strided_slice %19 {offsets = [0, 0], sizes = [16, 24], strides = [1, 1]} : vector<16x32xf32> to vector<16x24xf32>
    %54 = tpu.concatenate %52, %53 in 1 : vector<16x8xf32>, vector<16x24xf32> -> vector<16x32xf32>
    %cst_22 = arith.constant 0.000000e+00 : f32
    %55 = vector.broadcast %cst_22 : f32 to vector<16x32xf32>
    %56 = arith.subf %55, %51 : vector<16x32xf32>
    %57 = vector.shape_cast %48 : vector<1x32xi1> to vector<1x32xi1>
    %58 = vector.broadcast %57 : vector<1x32xi1> to vector<16x32xi1>
    %59 = arith.select %58, %56, %54 : vector<16x32xi1>, vector<16x32xf32>
    %60 = tpu.concatenate %28, %28 in 1 : vector<16x16xf32>, vector<16x16xf32> -> vector<16x32xf32>
    %61 = tpu.concatenate %29, %29 in 1 : vector<16x16xf32>, vector<16x16xf32> -> vector<16x32xf32>
    %62 = arith.mulf %19, %60 : vector<16x32xf32>
    %63 = arith.mulf %59, %61 : vector<16x32xf32>
    %64 = arith.addf %62, %63 : vector<16x32xf32>
    %65 = arith.truncf %64 : vector<16x32xf32> to vector<16x32xbf16>
    %c0_23 = arith.constant 0 : index
    %c0_24 = arith.constant 0 : index
    %66 = vector.load %arg9[%c0_23, %c0_24] : memref<16x32xbf16, #tpu.memory_space<vmem>>, vector<16x32xbf16>
    tpu.vector_store %arg9[%c0_23, %c0_24], %65 {strides = array<i32>} : memref<16x32xbf16, #tpu.memory_space<vmem>>, vector<16x32xbf16>,
    %67 = tpu.iota {dimensions = array<i32: 1>} : vector<1x32xi32>
    %c16_i32_25 = arith.constant 16 : i32
    %c0_i32_26 = arith.constant 0 : i32
    %68 = arith.cmpi eq, %c16_i32_25, %c0_i32_26 : i32
    %c1_i32_27 = arith.constant 1 : i32
    %69 = arith.select %68, %c1_i32_27, %c16_i32_25 : i32
    %70 = vector.broadcast %69 : i32 to vector<1x32xi32>
    %71 = arith.remsi %67, %70 : vector<1x32xi32>
    %c0_i32_28 = arith.constant 0 : i32
    %72 = vector.broadcast %c0_i32_28 : i32 to vector<1x32xi32>
    %73 = arith.cmpi ne, %71, %72 : vector<1x32xi32>
    %c0_i32_29 = arith.constant 0 : i32
    %74 = vector.broadcast %c0_i32_29 : i32 to vector<1x32xi32>
    %75 = arith.cmpi slt, %71, %74 : vector<1x32xi32>
    %c0_i32_30 = arith.constant 0 : i32
    %76 = arith.cmpi slt, %69, %c0_i32_30 : i32
    %77 = vector.broadcast %76 : i1 to vector<1x32xi1>
    %78 = vector.broadcast %77 : vector<1x32xi1> to vector<1x32xi1>
    %79 = arith.xori %75, %78 : vector<1x32xi1>
    %80 = arith.andi %79, %73 : vector<1x32xi1>
    %81 = vector.broadcast %69 : i32 to vector<1x32xi32>
    %82 = arith.addi %71, %81 : vector<1x32xi32>
    %83 = arith.select %80, %82, %71 : vector<1x32xi1>, vector<1x32xi32>
    %c8_i32_31 = arith.constant 8 : i32
    %84 = vector.broadcast %c8_i32_31 : i32 to vector<1x32xi32>
    %85 = arith.cmpi slt, %83, %84 : vector<1x32xi32>
    %86 = vector.extract_strided_slice %20 {offsets = [0, 8], sizes = [16, 24], strides = [1, 1]} : vector<16x32xf32> to vector<16x24xf32>
    %87 = vector.extract_strided_slice %20 {offsets = [0, 0], sizes = [16, 8], strides = [1, 1]} : vector<16x32xf32> to vector<16x8xf32>
    %88 = tpu.concatenate %86, %87 in 1 : vector<16x24xf32>, vector<16x8xf32> -> vector<16x32xf32>
    %89 = vector.extract_strided_slice %20 {offsets = [0, 24], sizes = [16, 8], strides = [1, 1]} : vector<16x32xf32> to vector<16x8xf32>
    %90 = vector.extract_strided_slice %20 {offsets = [0, 0], sizes = [16, 24], strides = [1, 1]} : vector<16x32xf32> to vector<16x24xf32>
    %91 = tpu.concatenate %89, %90 in 1 : vector<16x8xf32>, vector<16x24xf32> -> vector<16x32xf32>
    %cst_32 = arith.constant 0.000000e+00 : f32
    %92 = vector.broadcast %cst_32 : f32 to vector<16x32xf32>
    %93 = arith.subf %92, %88 : vector<16x32xf32>
    %94 = vector.shape_cast %85 : vector<1x32xi1> to vector<1x32xi1>
    %95 = vector.broadcast %94 : vector<1x32xi1> to vector<16x32xi1>
    %96 = arith.select %95, %93, %91 : vector<16x32xi1>, vector<16x32xf32>
    %97 = tpu.concatenate %28, %28 in 1 : vector<16x16xf32>, vector<16x16xf32> -> vector<16x32xf32>
    %98 = tpu.concatenate %29, %29 in 1 : vector<16x16xf32>, vector<16x16xf32> -> vector<16x32xf32>
    %99 = arith.mulf %20, %97 : vector<16x32xf32>
    %100 = arith.mulf %96, %98 : vector<16x32xf32>
    %101 = arith.addf %99, %100 : vector<16x32xf32>
    %102 = arith.truncf %101 : vector<16x32xf32> to vector<16x32xbf16>
    %c0_33 = arith.constant 0 : index
    %c0_34 = arith.constant 0 : index
    %103 = vector.load %arg10[%c0_33, %c0_34] : memref<16x32xbf16, #tpu.memory_space<vmem>>, vector<16x32xbf16>
    tpu.vector_store %arg10[%c0_33, %c0_34], %102 {strides = array<i32>} : memref<16x32xbf16, #tpu.memory_space<vmem>>, vector<16x32xbf16>,
    return
  }
  func.func @transform_0(%arg0: i32) -> (i32, i32) {
    %c0_i32 = arith.constant 0 : i32
    %c0_i32_0 = arith.constant 0 : i32
    return %arg0, %c0_i32 : i32, i32
  }
  func.func @transform_1(%arg0: i32) -> (i32, i32) {
    %c0_i32 = arith.constant 0 : i32
    %c0_i32_0 = arith.constant 0 : i32
    %c0_i32_1 = arith.constant 0 : i32
    return %c0_i32, %c0_i32_0 : i32, i32
  }
  func.func @transform_2(%arg0: i32) -> (i32, i32) {
    %c0_i32 = arith.constant 0 : i32
    %c0_i32_0 = arith.constant 0 : i32
    %c0_i32_1 = arith.constant 0 : i32
    return %c0_i32, %c0_i32_0 : i32, i32
  }
  func.func @transform_3(%arg0: i32) -> (i32, i32) {
    %c0_i32 = arith.constant 0 : i32
    %c0_i32_0 = arith.constant 0 : i32
    return %arg0, %c0_i32 : i32, i32
  }
  func.func @transform_4(%arg0: i32) -> (i32, i32) {
    %c0_i32 = arith.constant 0 : i32
    %c0_i32_0 = arith.constant 0 : i32
    return %arg0, %c0_i32 : i32, i32
  }
  func.func @transform_5(%arg0: i32) -> (i32, i32) {
    %c0_i32 = arith.constant 0 : i32
    %c0_i32_0 = arith.constant 0 : i32
    return %arg0, %c0_i32 : i32, i32
  }
  func.func @transform_6(%arg0: i32) -> (i32, i32) {
    %c0_i32 = arith.constant 0 : i32
    %c0_i32_0 = arith.constant 0 : i32
    return %arg0, %c0_i32 : i32, i32
  }
  func.func @transform_7(%arg0: i32) -> (i32, i32) {
    %c0_i32 = arith.constant 0 : i32
    %c0_i32_0 = arith.constant 0 : i32
    return %arg0, %c0_i32 : i32, i32
  }
  func.func @transform_8(%arg0: i32) -> (i32, i32) {
    %c0_i32 = arith.constant 0 : i32
    %c0_i32_0 = arith.constant 0 : i32
    return %arg0, %c0_i32 : i32, i32
  }
  func.func @transform_9(%arg0: i32) -> (i32, i32) {
    %c0_i32 = arith.constant 0 : i32
    %c0_i32_0 = arith.constant 0 : i32
    return %arg0, %c0_i32 : i32, i32
  }
}

module attributes {stable_mosaic.version = 11 : i64} {
  func.func @_rmsnorm_qkv_rope_kernel(%arg0: i32, %arg1: memref<16x32xf32, #tpu.memory_space<vmem>>, %arg2: memref<1x32xf32, #tpu.memory_space<vmem>>, %arg3: memref<32x96xbf16, #tpu.memory_space<vmem>>, %arg4: memref<16x16xf32, #tpu.memory_space<vmem>>, %arg5: memref<16x16xf32, #tpu.memory_space<vmem>>, %arg6: memref<16x32xbf16, #tpu.memory_space<vmem>>, %arg7: memref<16x32xbf16, #tpu.memory_space<vmem>>, %arg8: memref<16x32xbf16, #tpu.memory_space<vmem>>, %arg9: memref<16x32xbf16, #tpu.memory_space<vmem>>, %arg10: memref<16x32xbf16, #tpu.memory_space<vmem>>) attributes {dimension_semantics = [#tpu.dimension_semantics<parallel>], iteration_bounds = array<i64: 1>, scalar_prefetch = 0 : i64, scratch_operands = 0 : i64, tpu.core_type = #tpu.core_type<tc>, window_params = [{transform_indices = @transform_0, window_bounds = array<i64: 16, 32>}, {pipeline_mode = #tpu.pipeline_mode<synchronous>, transform_indices = @transform_1, window_bounds = array<i64: 1, 32>}, {pipeline_mode = #tpu.pipeline_mode<synchronous>, transform_indices = @transform_2, window_bounds = array<i64: 32, 96>}, {transform_indices = @transform_3, window_bounds = array<i64: 16, 16>}, {transform_indices = @transform_4, window_bounds = array<i64: 16, 16>}, {transform_indices = @transform_5, window_bounds = array<i64: 16, 32>}, {transform_indices = @transform_6, window_bounds = array<i64: 16, 32>}, {transform_indices = @transform_7, window_bounds = array<i64: 16, 32>}, {transform_indices = @transform_8, window_bounds = array<i64: 16, 32>}, {transform_indices = @transform_9, window_bounds = array<i64: 16, 32>}]} {
    %c0 = arith.constant 0 : index
    %c0_0 = arith.constant 0 : index
    %0 = vector.load %arg1[%c0, %c0_0] : memref<16x32xf32, #tpu.memory_space<vmem>>, vector<16x32xf32>
    %1 = arith.mulf %0, %0 : vector<16x32xf32>
    %cst = arith.constant dense<0.000000e+00> : vector<16xf32>
    %2 = vector.multi_reduction <add>, %1, %cst [1] : vector<16x32xf32> to vector<16xf32>
    %3 = vector.shape_cast %2 : vector<16xf32> to vector<16x1xf32>
    %cst_1 = arith.constant 3.200000e+01 : f32
    %4 = vector.broadcast %cst_1 : f32 to vector<16x1xf32>
    %5 = arith.divf %3, %4 : vector<16x1xf32>
    %cst_2 = arith.constant 9.99999997E-7 : f32
    %6 = vector.broadcast %cst_2 : f32 to vector<16x1xf32>
    %7 = arith.addf %5, %6 : vector<16x1xf32>
    %8 = math.rsqrt %7 : vector<16x1xf32>
    %9 = vector.broadcast %8 : vector<16x1xf32> to vector<16x32xf32>
    %10 = arith.mulf %0, %9 : vector<16x32xf32>
    %c0_3 = arith.constant 0 : index
    %c0_4 = arith.constant 0 : index
    %11 = vector.load %arg2[%c0_3, %c0_4] : memref<1x32xf32, #tpu.memory_space<vmem>>, vector<1x32xf32>
    %cst_5 = arith.constant 1.000000e+00 : f32
    %12 = vector.broadcast %cst_5 : f32 to vector<1x32xf32>
    %13 = arith.addf %12, %11 : vector<1x32xf32>
    %14 = vector.broadcast %13 : vector<1x32xf32> to vector<16x32xf32>
    %15 = arith.mulf %10, %14 : vector<16x32xf32>
    %16 = arith.truncf %15 : vector<16x32xf32> to vector<16x32xbf16>
    %c0_6 = arith.constant 0 : index
    %c0_7 = arith.constant 0 : index
    %17 = vector.load %arg3[%c0_6, %c0_7] : memref<32x96xbf16, #tpu.memory_space<vmem>>, vector<32x96xbf16>
    %cst_8 = arith.constant dense<0.000000e+00> : vector<16x96xf32>
    %18 = tpu.matmul %16, %17, %cst_8 {dimension_numbers = #tpu.dot_dimension_numbers<[1], [0], [0], [1], [0, 0, 1, 1], [], []>} : vector<16x32xbf16>, vector<32x96xbf16>, vector<16x96xf32> -> vector<16x96xf32>
    %19 = vector.extract_strided_slice %18 {offsets = [0, 0], sizes = [16, 32], strides = [1, 1]} : vector<16x96xf32> to vector<16x32xf32>
    %20 = vector.extract_strided_slice %18 {offsets = [0, 32], sizes = [16, 32], strides = [1, 1]} : vector<16x96xf32> to vector<16x32xf32>
    %21 = vector.extract_strided_slice %18 {offsets = [0, 64], sizes = [16, 32], strides = [1, 1]} : vector<16x96xf32> to vector<16x32xf32>
    %22 = arith.truncf %19 : vector<16x32xf32> to vector<16x32xbf16>
    %c0_9 = arith.constant 0 : index
    %c0_10 = arith.constant 0 : index
    %23 = vector.load %arg6[%c0_9, %c0_10] : memref<16x32xbf16, #tpu.memory_space<vmem>>, vector<16x32xbf16>
    tpu.vector_store %arg6[%c0_9, %c0_10], %22 {strides = array<i32>} : memref<16x32xbf16, #tpu.memory_space<vmem>>, vector<16x32xbf16>,
    %24 = arith.truncf %20 : vector<16x32xf32> to vector<16x32xbf16>
    %c0_11 = arith.constant 0 : index
    %c0_12 = arith.constant 0 : index
    %25 = vector.load %arg7[%c0_11, %c0_12] : memref<16x32xbf16, #tpu.memory_space<vmem>>, vector<16x32xbf16>
    tpu.vector_store %arg7[%c0_11, %c0_12], %24 {strides = array<i32>} : memref<16x32xbf16, #tpu.memory_space<vmem>>, vector<16x32xbf16>,
    %26 = arith.truncf %21 : vector<16x32xf32> to vector<16x32xbf16>
    %c0_13 = arith.constant 0 : index
    %c0_14 = arith.constant 0 : index
    %27 = vector.load %arg8[%c0_13, %c0_14] : memref<16x32xbf16, #tpu.memory_space<vmem>>, vector<16x32xbf16>
    tpu.vector_store %arg8[%c0_13, %c0_14], %26 {strides = array<i32>} : memref<16x32xbf16, #tpu.memory_space<vmem>>, vector<16x32xbf16>,
    %c0_15 = arith.constant 0 : index
    %c0_16 = arith.constant 0 : index
    %28 = vector.load %arg4[%c0_15, %c0_16] : memref<16x16xf32, #tpu.memory_space<vmem>>, vector<16x16xf32>
    %c0_17 = arith.constant 0 : index
    %c0_18 = arith.constant 0 : index
    %29 = vector.load %arg5[%c0_17, %c0_18] : memref<16x16xf32, #tpu.memory_space<vmem>>, vector<16x16xf32>
    %30 = tpu.iota {dimensions = array<i32: 1>} : vector<1x32xi32>
    %c16_i32 = arith.constant 16 : i32
    %c0_i32 = arith.constant 0 : i32
    %31 = arith.cmpi eq, %c16_i32, %c0_i32 : i32
    %c1_i32 = arith.constant 1 : i32
    %32 = arith.select %31, %c1_i32, %c16_i32 : i32
    %33 = vector.broadcast %32 : i32 to vector<1x32xi32>
    %34 = arith.remsi %30, %33 : vector<1x32xi32>
    %c0_i32_19 = arith.constant 0 : i32
    %35 = vector.broadcast %c0_i32_19 : i32 to vector<1x32xi32>
    %36 = arith.cmpi ne, %34, %35 : vector<1x32xi32>
    %c0_i32_20 = arith.constant 0 : i32
    %37 = vector.broadcast %c0_i32_20 : i32 to vector<1x32xi32>
    %38 = arith.cmpi slt, %34, %37 : vector<1x32xi32>
    %c0_i32_21 = arith.constant 0 : i32
    %39 = arith.cmpi slt, %32, %c0_i32_21 : i32
    %40 = vector.broadcast %39 : i1 to vector<1x32xi1>
    %41 = vector.broadcast %40 : vector<1x32xi1> to vector<1x32xi1>
    %42 = arith.xori %38, %41 : vector<1x32xi1>
    %43 = arith.andi %42, %36 : vector<1x32xi1>
    %44 = vector.broadcast %32 : i32 to vector<1x32xi32>
    %45 = arith.addi %34, %44 : vector<1x32xi32>
    %46 = arith.select %43, %45, %34 : vector<1x32xi1>, vector<1x32xi32>
    %c8_i32 = arith.constant 8 : i32
    %47 = vector.broadcast %c8_i32 : i32 to vector<1x32xi32>
    %48 = arith.cmpi slt, %46, %47 : vector<1x32xi32>
    %49 = vector.extract_strided_slice %19 {offsets = [0, 8], sizes = [16, 24], strides = [1, 1]} : vector<16x32xf32> to vector<16x24xf32>
    %50 = vector.extract_strided_slice %19 {offsets = [0, 0], sizes = [16, 8], strides = [1, 1]} : vector<16x32xf32> to vector<16x8xf32>
    %51 = tpu.concatenate %49, %50 in 1 : vector<16x24xf32>, vector<16x8xf32> -> vector<16x32xf32>
    %52 = vector.extract_strided_slice %19 {offsets = [0, 24], sizes = [16, 8], strides = [1, 1]} : vector<16x32xf32> to vector<16x8xf32>
    %53 = vector.extract_strided_slice %19 {offsets = [0, 0], sizes = [16, 24], strides = [1, 1]} : vector<16x32xf32> to vector<16x24xf32>
    %54 = tpu.concatenate %52, %53 in 1 : vector<16x8xf32>, vector<16x24xf32> -> vector<16x32xf32>
    %cst_22 = arith.constant 0.000000e+00 : f32
    %55 = vector.broadcast %cst_22 : f32 to vector<16x32xf32>
    %56 = arith.subf %55, %51 : vector<16x32xf32>
    %57 = vector.shape_cast %48 : vector<1x32xi1> to vector<1x32xi1>
    %58 = vector.broadcast %57 : vector<1x32xi1> to vector<16x32xi1>
    %59 = arith.select %58, %56, %54 : vector<16x32xi1>, vector<16x32xf32>
    %60 = tpu.concatenate %28, %28 in 1 : vector<16x16xf32>, vector<16x16xf32> -> vector<16x32xf32>
    %61 = tpu.concatenate %29, %29 in 1 : vector<16x16xf32>, vector<16x16xf32> -> vector<16x32xf32>
    %62 = arith.mulf %19, %60 : vector<16x32xf32>
    %63 = arith.mulf %59, %61 : vector<16x32xf32>
    %64 = arith.addf %62, %63 : vector<16x32xf32>
    %65 = arith.truncf %64 : vector<16x32xf32> to vector<16x32xbf16>
    %c0_23 = arith.constant 0 : index
    %c0_24 = arith.constant 0 : index
    %66 = vector.load %arg9[%c0_23, %c0_24] : memref<16x32xbf16, #tpu.memory_space<vmem>>, vector<16x32xbf16>
    tpu.vector_store %arg9[%c0_23, %c0_24], %65 {strides = array<i32>} : memref<16x32xbf16, #tpu.memory_space<vmem>>, vector<16x32xbf16>,
    %67 = tpu.iota {dimensions = array<i32: 1>} : vector<1x32xi32>
    %c16_i32_25 = arith.constant 16 : i32
    %c0_i32_26 = arith.constant 0 : i32
    %68 = arith.cmpi eq, %c16_i32_25, %c0_i32_26 : i32
    %c1_i32_27 = arith.constant 1 : i32
    %69 = arith.select %68, %c1_i32_27, %c16_i32_25 : i32
    %70 = vector.broadcast %69 : i32 to vector<1x32xi32>
    %71 = arith.remsi %67, %70 : vector<1x32xi32>
    %c0_i32_28 = arith.constant 0 : i32
    %72 = vector.broadcast %c0_i32_28 : i32 to vector<1x32xi32>
    %73 = arith.cmpi ne, %71, %72 : vector<1x32xi32>
    %c0_i32_29 = arith.constant 0 : i32
    %74 = vector.broadcast %c0_i32_29 : i32 to vector<1x32xi32>
    %75 = arith.cmpi slt, %71, %74 : vector<1x32xi32>
    %c0_i32_30 = arith.constant 0 : i32
    %76 = arith.cmpi slt, %69, %c0_i32_30 : i32
    %77 = vector.broadcast %76 : i1 to vector<1x32xi1>
    %78 = vector.broadcast %77 : vector<1x32xi1> to vector<1x32xi1>
    %79 = arith.xori %75, %78 : vector<1x32xi1>
    %80 = arith.andi %79, %73 : vector<1x32xi1>
    %81 = vector.broadcast %69 : i32 to vector<1x32xi32>
    %82 = arith.addi %71, %81 : vector<1x32xi32>
    %83 = arith.select %80, %82, %71 : vector<1x32xi1>, vector<1x32xi32>
    %c8_i32_31 = arith.constant 8 : i32
    %84 = vector.broadcast %c8_i32_31 : i32 to vector<1x32xi32>
    %85 = arith.cmpi slt, %83, %84 : vector<1x32xi32>
    %86 = vector.extract_strided_slice %20 {offsets = [0, 8], sizes = [16, 24], strides = [1, 1]} : vector<16x32xf32> to vector<16x24xf32>
    %87 = vector.extract_strided_slice %20 {offsets = [0, 0], sizes = [16, 8], strides = [1, 1]} : vector<16x32xf32> to vector<16x8xf32>
    %88 = tpu.concatenate %86, %87 in 1 : vector<16x24xf32>, vector<16x8xf32> -> vector<16x32xf32>
    %89 = vector.extract_strided_slice %20 {offsets = [0, 24], sizes = [16, 8], strides = [1, 1]} : vector<16x32xf32> to vector<16x8xf32>
    %90 = vector.extract_strided_slice %20 {offsets = [0, 0], sizes = [16, 24], strides = [1, 1]} : vector<16x32xf32> to vector<16x24xf32>
    %91 = tpu.concatenate %89, %90 in 1 : vector<16x8xf32>, vector<16x24xf32> -> vector<16x32xf32>
    %cst_32 = arith.constant 0.000000e+00 : f32
    %92 = vector.broadcast %cst_32 : f32 to vector<16x32xf32>
    %93 = arith.subf %92, %88 : vector<16x32xf32>
    %94 = vector.shape_cast %85 : vector<1x32xi1> to vector<1x32xi1>
    %95 = vector.broadcast %94 : vector<1x32xi1> to vector<16x32xi1>
    %96 = arith.select %95, %93, %91 : vector<16x32xi1>, vector<16x32xf32>
    %97 = tpu.concatenate %28, %28 in 1 : vector<16x16xf32>, vector<16x16xf32> -> vector<16x32xf32>
    %98 = tpu.concatenate %29, %29 in 1 : vector<16x16xf32>, vector<16x16xf32> -> vector<16x32xf32>
    %99 = arith.mulf %20, %97 : vector<16x32xf32>
    %100 = arith.mulf %96, %98 : vector<16x32xf32>
    %101 = arith.addf %99, %100 : vector<16x32xf32>
    %102 = arith.truncf %101 : vector<16x32xf32> to vector<16x32xbf16>
    %c0_33 = arith.constant 0 : index
    %c0_34 = arith.constant 0 : index
    %103 = vector.load %arg10[%c0_33, %c0_34] : memref<16x32xbf16, #tpu.memory_space<vmem>>, vector<16x32xbf16>
    tpu.vector_store %arg10[%c0_33, %c0_34], %102 {strides = array<i32>} : memref<16x32xbf16, #tpu.memory_space<vmem>>, vector<16x32xbf16>,
    return
  }
  func.func @transform_0(%arg0: i32) -> (i32, i32) {
    %c0_i32 = arith.constant 0 : i32
    %c0_i32_0 = arith.constant 0 : i32
    return %arg0, %c0_i32 : i32, i32
  }
  func.func @transform_1(%arg0: i32) -> (i32, i32) {
    %c0_i32 = arith.constant 0 : i32
    %c0_i32_0 = arith.constant 0 : i32
    %c0_i32_1 = arith.constant 0 : i32
    return %c0_i32, %c0_i32_0 : i32, i32
  }
  func.func @transform_2(%arg0: i32) -> (i32, i32) {
    %c0_i32 = arith.constant 0 : i32
    %c0_i32_0 = arith.constant 0 : i32
    %c0_i32_1 = arith.constant 0 : i32
    return %c0_i32, %c0_i32_0 : i32, i32
  }
  func.func @transform_3(%arg0: i32) -> (i32, i32) {
    %c0_i32 = arith.constant 0 : i32
    %c0_i32_0 = arith.constant 0 : i32
    return %arg0, %c0_i32 : i32, i32
  }
  func.func @transform_4(%arg0: i32) -> (i32, i32) {
    %c0_i32 = arith.constant 0 : i32
    %c0_i32_0 = arith.constant 0 : i32
    return %arg0, %c0_i32 : i32, i32
  }
  func.func @transform_5(%arg0: i32) -> (i32, i32) {
    %c0_i32 = arith.constant 0 : i32
    %c0_i32_0 = arith.constant 0 : i32
    return %arg0, %c0_i32 : i32, i32
  }
  func.func @transform_6(%arg0: i32) -> (i32, i32) {
    %c0_i32 = arith.constant 0 : i32
    %c0_i32_0 = arith.constant 0 : i32
    return %arg0, %c0_i32 : i32, i32
  }
  func.func @transform_7(%arg0: i32) -> (i32, i32) {
    %c0_i32 = arith.constant 0 : i32
    %c0_i32_0 = arith.constant 0 : i32
    return %arg0, %c0_i32 : i32, i32
  }
  func.func @transform_8(%arg0: i32) -> (i32, i32) {
    %c0_i32 = arith.constant 0 : i32
    %c0_i32_0 = arith.constant 0 : i32
    return %arg0, %c0_i32 : i32, i32
  }
  func.func @transform_9(%arg0: i32) -> (i32, i32) {
    %c0_i32 = arith.constant 0 : i32
    %c0_i32_0 = arith.constant 0 : i32
    return %arg0, %c0_i32 : i32, i32
  }
}

</mosaic_0001>

<llo_original>
// kernel: tpu_custom_call.1
$region0: #{tpu_custom_call.1}
  #allocation0 [shape = 'u32[]', space=smem, size = 0x4, offset = 0x4, fixed_abs, tag = 'smem constant byte address 0x4 - core index']
  #allocation1 [shape = 'u32[144,128]{1,0:T(1,128)}', space=vmem, size = 0x12000, scoped, tag = 'internal scratch']
  %s0 = inlined_call_operand.hbm [shape: f32[16,32], index: 0, kind: input, shape index: {}]
  %s1 = inlined_call_operand.vmem [shape: f32[1,32], index: 1, kind: input, shape index: {}]
  %s2 = inlined_call_operand.hbm [shape: bf16[32,96], index: 2, kind: input, shape index: {}]
  %s3 = inlined_call_operand.hbm [shape: f32[16,16], index: 3, kind: input, shape index: {}]
  %s4 = inlined_call_operand.hbm [shape: f32[16,16], index: 4, kind: input, shape index: {}]
  %s5 = inlined_call_operand.hbm [shape: bf16[16,32], index: 5, kind: output, shape index: {0}]
  %s6 = inlined_call_operand.hbm [shape: bf16[16,32], index: 6, kind: output, shape index: {1}]
  %s7 = inlined_call_operand.hbm [shape: bf16[16,32], index: 7, kind: output, shape index: {2}]
  %s8 = inlined_call_operand.hbm [shape: bf16[16,32], index: 8, kind: output, shape index: {3}]
  %s9 = inlined_call_operand.hbm [shape: bf16[16,32], index: 9, kind: output, shape index: {4}]
  %10 = xla_tuple %s5, %s6, %s7, %s8, %s9
  %s11 = sld [smem:[#allocation0]]
  $region78: #{tpu_custom_call.1} parent=0
    _
  %s13 = ssub.s32 1, %s11
  %s14 = scalar_select 0, %s13, %s11
  $region1: #{tpu_custom_call.1} parent=0
    #allocation2 [shape = 'u8[8192]{0}', space=vmem, size = 0x2000, scoped, tag = 'input window, operand 0, single buffered']
    #allocation3 [shape = 's32[1]{0}', space=sflag, size = 0x4, scoped, tag = 'scoped memory for tpu_custom_call.1']
    #allocation4 [shape = 's32[1]{0}', space=sflag, size = 0x4, scoped, tag = 'scoped memory for tpu_custom_call.1']
    #allocation5 [shape = 'u8[8192]{0}', space=vmem, size = 0x2000, scoped, tag = 'input window, operand 2, single buffered']
    #allocation6 [shape = 's32[1]{0}', space=sflag, size = 0x4, scoped, tag = 'scoped memory for tpu_custom_call.1']
    #allocation7 [shape = 'u8[8192]{0}', space=vmem, size = 0x2000, scoped, tag = 'input window, operand 3, single buffered']
    #allocation8 [shape = 'u8[8192]{0}', space=vmem, size = 0x2000, scoped, tag = 'input window, operand 4, single buffered']
    #allocation9 [shape = 's32[1]{0}', space=sflag, size = 0x4, scoped, tag = 'scoped memory for tpu_custom_call.1']
    #allocation10 [shape = 'u8[4096]{0}', space=vmem, size = 0x1000, scoped, tag = 'output window, operand 0, single buffered']
    #allocation11 [shape = 'u8[4096]{0}', space=vmem, size = 0x1000, scoped, tag = 'output window, operand 1, single buffered']
    #allocation12 [shape = 's32[1]{0}', space=sflag, size = 0x4, scoped, tag = 'scoped memory for tpu_custom_call.1']
    #allocation13 [shape = 'u8[4096]{0}', space=vmem, size = 0x1000, scoped, tag = 'output window, operand 2, single buffered']
    #allocation14 [shape = 'u8[4096]{0}', space=vmem, size = 0x1000, scoped, tag = 'output window, operand 3, single buffered']
    #allocation15 [shape = 's32[1]{0}', space=sflag, size = 0x4, scoped, tag = 'scoped memory for tpu_custom_call.1']
    #allocation16 [shape = 'u8[4096]{0}', space=vmem, size = 0x1000, scoped, tag = 'output window, operand 4, single buffered']
    %15 = vsyncpa [#allocation3], 0
    %16 = vsyncpa [#allocation6], 0
    %17 = vsyncpa [#allocation9], 0
    %18 = vsyncpa [#allocation4], 0
    %19 = vsyncpa [#allocation12], 0
    %20 = vsyncpa [#allocation15], 0
    // Predicated region
    $region2: #{tpu_custom_call.1} parent=1 // pred_check
      _
    $region3: #{tpu_custom_call.1} parent=1 // pred_check_branch
      %22 = sbr.rel (0) target = $region5
    $region4: #{tpu_custom_call.1} parent=1 // pred_region
      %s24 = ssub.s32 256, 256
      %25 = vsyncadd [#allocation3], %s24
      %s26 = sshll.u32 [#allocation2], 4
      %s27 = int_to_ptr.vmem [resolvable:$true] %s26
      %32 = dma.hbm_to_vmem [thread:$0]  %s0, 256, %s27, [#allocation3], 128, 128, 8
    $region5: #{tpu_custom_call.1} parent=1 // pred_fallthru
      _
    // Predicated region
    $region6: #{tpu_custom_call.1} parent=1 // pred_check
      _
    $region7: #{tpu_custom_call.1} parent=1 // pred_check_branch
      %34 = sbr.rel (0) target = $region9
    $region8: #{tpu_custom_call.1} parent=1 // pred_region
      _
    $region9: #{tpu_custom_call.1} parent=1 // pred_fallthru
      _
    // Predicated region
    $region10: #{tpu_custom_call.1} parent=1 // pred_check
      _
    $region11: #{tpu_custom_call.1} parent=1 // pred_check_branch
      %36 = sbr.rel (0) target = $region13
    $region12: #{tpu_custom_call.1} parent=1 // pred_region
      %s38 = ssub.s32 256, 256
      %39 = vsyncadd [#allocation6], %s38
      %s40 = sshll.u32 [#allocation5], 4
      %s41 = int_to_ptr.vmem [resolvable:$true] %s40
      %46 = dma.hbm_to_vmem [thread:$0]  %s2, 256, %s41, [#allocation6], 64, 64, 4
    $region13: #{tpu_custom_call.1} parent=1 // pred_fallthru
      _
    // Predicated region
    $region14: #{tpu_custom_call.1} parent=1 // pred_check
      _
    $region15: #{tpu_custom_call.1} parent=1 // pred_check_branch
      %48 = sbr.rel (0) target = $region17
    $region16: #{tpu_custom_call.1} parent=1 // pred_region
      %s50 = ssub.s32 256, 256
      %51 = vsyncadd [#allocation6], %s50
      %s52 = sshll.u32 [#allocation7], 4
      %s53 = int_to_ptr.vmem [resolvable:$true] %s52
      %58 = dma.hbm_to_vmem [thread:$0]  %s3, 256, %s53, [#allocation6], 128, 128, 8
    $region17: #{tpu_custom_call.1} parent=1 // pred_fallthru
      _
    // Predicated region
    $region18: #{tpu_custom_call.1} parent=1 // pred_check
      _
    $region19: #{tpu_custom_call.1} parent=1 // pred_check_branch
      %60 = sbr.rel (0) target = $region21
    $region20: #{tpu_custom_call.1} parent=1 // pred_region
      %s62 = ssub.s32 256, 256
      %63 = vsyncadd [#allocation9], %s62
      %s64 = sshll.u32 [#allocation8], 4
      %s65 = int_to_ptr.vmem [resolvable:$true] %s64
      %70 = dma.hbm_to_vmem [thread:$0]  %s4, 256, %s65, [#allocation9], 128, 128, 8
    $region21: #{tpu_custom_call.1} parent=1 // pred_fallthru
      _
    // Predicated region
    $region22: #{tpu_custom_call.1} parent=1 // pred_check
      _
    $region23: #{tpu_custom_call.1} parent=1 // pred_check_branch
      %72 = sbr.rel (0) target = $region25
    $region24: #{tpu_custom_call.1} parent=1 // pred_region
      %73 = dma.done [#allocation3], 256
    $region25: #{tpu_custom_call.1} parent=1 // pred_fallthru
      _
    // Predicated region
    $region26: #{tpu_custom_call.1} parent=1 // pred_check
      _
    $region27: #{tpu_custom_call.1} parent=1 // pred_check_branch
      %75 = sbr.rel (0) target = $region29
    $region28: #{tpu_custom_call.1} parent=1 // pred_region
      %76 = dma.done [#allocation6], 256
    $region29: #{tpu_custom_call.1} parent=1 // pred_fallthru
      _
    // Predicated region
    $region30: #{tpu_custom_call.1} parent=1 // pred_check
      _
    $region31: #{tpu_custom_call.1} parent=1 // pred_check_branch
      %78 = sbr.rel (0) target = $region33
    $region32: #{tpu_custom_call.1} parent=1 // pred_region
      %79 = dma.done [#allocation6], 256
    $region33: #{tpu_custom_call.1} parent=1 // pred_fallthru
      _
    // Predicated region
    $region34: #{tpu_custom_call.1} parent=1 // pred_check
      _
    $region35: #{tpu_custom_call.1} parent=1 // pred_check_branch
      %81 = sbr.rel (0) target = $region37
    $region36: #{tpu_custom_call.1} parent=1 // pred_region
      %82 = dma.done [#allocation9], 256
    $region37: #{tpu_custom_call.1} parent=1 // pred_fallthru
      _
    %v84 = vld [vmem:[#allocation2] sm:$0xff]
    %v85 = vld [vmem:[#allocation2 + $0x8] sm:$0xff]
    %v86 = vmul.f32 %v84, %v84
    %v87 = vmul.f32 %v85, %v85
    %vm88 = vcmask 261120
    %v89 = vsel %vm88, %v86, 0.0
    %90 = vadd.xlane.f32.xlu0 %v89
    %v91 = vpop.xlane.xlu0 %90
    %v92 = vsel %vm88, %v87, 0.0
    %93 = vadd.xlane.f32.xlu0 %v92
    %v94 = vpop.xlane.xlu0 %93
    %v95 = vrcp.pop 32.0
    %v96 = vmul.f32 %v91, %v95
    %v97 = vmul.f32 %v94, %v95
    %v98 = vadd.f32 %v96, 1e-06
    %v99 = vadd.f32 %v97, 1e-06
    %v100 = vrsqrt.pop %v98
    %v101 = vrsqrt.pop %v99
    %v102 = vmul.f32 %v84, %v100
    %v103 = vmul.f32 %v85, %v101
    %v104 = vld [vmem:[%s1] sm:$0x1]
    %v105 = vadd.f32 %v104, 1.0
    %v107 = vlaneseq
    %v108 = vshrl.u32 %v107, 7
    %v109 = vsub.s32 0, %v108
    %v110 = vrot.slane %v105, %v109
    %v112 = vmul.f32 %v102, %v110
    %v113 = vmul.f32 %v103, %v110
    %v114 = vpack.c.bf16 %v113, %v112
    %v115 = vld [vmem:[#allocation5] sm:$0xf]
    %v116 = vld [vmem:[#allocation5 + $0x4] sm:$0xf]
    %v117 = vld [vmem:[#allocation5 + $0x8] sm:$0xf]
    %v118 = vld [vmem:[#allocation5 + $0xc] sm:$0xf]
    %v123 = vunpack.c.l.b16 %v115
    %v124 = vunpack.c.l.b16 %v116
    %v125 = vunpack.c.l.b16 %v117
    %v126 = vunpack.c.l.b16 %v118
    %v127 = vpack.c.b16 %v124, %v123
    %v128 = vpack.c.b16 %v126, %v125
    %v132 = vsel %vm88, %v114, 0
    %134 = vmatprep.subr.bf16.mxu0 0
    %135 = vmatpush1.bf16.msra.mxu0 %v127
    %136 = vmatprep.subr.bf16.mxu0 0
    %137 = vmatpush1.bf16.msra.mxu0 %v128
    %138 = vmatprep.subr.bf16.mxu0 0
    %139 = vmatpush1.bf16.msra.mxu0 0
    %140 = vmatprep.subr.bf16.mxu0 0
    %141 = vmatpush1.bf16.msra.mxu0 0
    %142 = vmatprep.subr.bf16.mxu0 0
    %143 = vmatpush1.bf16.msra.mxu0 0
    %144 = vmatprep.subr.bf16.mxu0 0
    %145 = vmatpush1.bf16.msra.mxu0 0
    %146 = vmatprep.subr.bf16.mxu0 0
    %147 = vmatpush1.bf16.msra.mxu0 0
    %148 = vmatprep.subr.bf16.mxu0 0
    %149 = vmatpush1.bf16.msra.mxu0 0
    %150 = vmatprep.subr.bf16.mxu0 0
    %151 = vmatpush1.bf16.msra.mxu0 0
    %152 = vmatprep.subr.bf16.mxu0 0
    %153 = vmatpush1.bf16.msra.mxu0 0
    %154 = vmatprep.subr.bf16.mxu0 0
    %155 = vmatpush1.bf16.msra.mxu0 0
    %156 = vmatprep.subr.bf16.mxu0 0
    %157 = vmatpush1.bf16.msra.mxu0 0
    %158 = vmatprep.subr.bf16.mxu0 0
    %159 = vmatpush1.bf16.msra.mxu0 0
    %160 = vmatprep.subr.bf16.mxu0 0
    %161 = vmatpush1.bf16.msra.mxu0 0
    %162 = vmatprep.subr.bf16.mxu0 0
    %163 = vmatpush1.bf16.msra.mxu0 0
    %164 = vmatprep.subr.bf16.mxu0 0
    %165 = vmatpush1.bf16.msra.mxu0 0
    %166 = vmatprep.mubr.bf16.mxu0 0
    %167 = vmatmul.mubr.bf16.gmra.mrb[0].mxu0 %v132
    %v168 = vpop.f32.mrb[0].mxu0
    %v169 = vadd.f32 0.0, %v168
    %v170 = vpop.f32.mrb[0].mxu0
    %v171 = vpop.f32.mrb[0].mxu0
    %v172 = vadd.f32 0.0, %v171
    %v173 = vpop.f32.mrb[0].mxu0
    %174 = vdwg.mxu0
    %v175 = vpack.c.bf16 %v172, %v169
    %v177 = vunpack.c.l.b16 %v175
    %v178 = vunpack.c.h.b16 %v175
    %v179 = vpack.c.b16 %v177, %v177
    %v180 = vpack.c.b16 %v178, %v178
    %vm183 = vcmask 257024
    %184 = vst.msk [vmem:[#allocation10] sm:$0xf] %vm183, %v179
    %185 = vst.msk [vmem:[#allocation10 + $0x4] sm:$0xf] %vm183, %v180
    %186 = vrot.lane.b32.xlu0 %v179, 96
    %v187 = vpop.permute.xlu0 %186
    %188 = vrot.lane.b32.xlu0 %v180, 96
    %v189 = vpop.permute.xlu0 %188
    %192 = vst.msk [vmem:[#allocation11] sm:$0xf] %vm183, %v187
    %193 = vst.msk [vmem:[#allocation11 + $0x4] sm:$0xf] %vm183, %v189
    %194 = vrot.lane.b32.xlu0 %v179, 64
    %v195 = vpop.permute.xlu0 %194
    %196 = vrot.lane.b32.xlu0 %v180, 64
    %v197 = vpop.permute.xlu0 %196
    %200 = vst.msk [vmem:[#allocation13] sm:$0xf] %vm183, %v195
    %201 = vst.msk [vmem:[#allocation13 + $0x4] sm:$0xf] %vm183, %v197
    %v202 = vld [vmem:[#allocation7] sm:$0xff]
    %v203 = vld [vmem:[#allocation7 + $0x8] sm:$0xff]
    %v204 = vld [vmem:[#allocation8] sm:$0xff]
    %v205 = vld [vmem:[#allocation8 + $0x8] sm:$0xff]
    %v206 = vlaneseq
    %v207 = vand.u32 %v206, 127
    %vm208 = vcmp.lt.s32.totalorder %v207, 0
    %v209 = vsub.s32 0, %v207
    %v210 = vsel %vm208, %v209, %v207
    %v211 = vshrl.u32 %v210, 4
    %v212 = vand.u32 %v210, 15
    %v213 = vsub.s32 0, %v212
    %v214 = vsel %vm208, %v213, %v212
    %vm215 = vcmp.ne.s32.totalorder %v214, 0
    %vm216 = vcmp.lt.s32.totalorder %v214, 0
    %vm217 = vmand %vm216, %vm215
    %v218 = vadd.s32 %v214, 16
    %v219 = vsel %vm217, %v218, %v214
    %vm220 = vcmp.lt.s32.totalorder %v219, 8
    %223 = vrot.lane.b32.xlu0 %v169, 120
    %v224 = vpop.permute.xlu0 %223
    %225 = vrot.lane.b32.xlu0 %v172, 120
    %v226 = vpop.permute.xlu0 %225
    %229 = vrot.lane.b32.xlu0 %v169, 24
    %v230 = vpop.permute.xlu0 %229
    %231 = vrot.lane.b32.xlu0 %v172, 24
    %v232 = vpop.permute.xlu0 %231
    %vm235 = vcmask 195584
    %v236 = vsel %vm235, %v224, %v230
    %v237 = vsel %vm235, %v226, %v232
    %238 = vrot.lane.b32.xlu0 %v169, 104
    %v239 = vpop.permute.xlu0 %238
    %240 = vrot.lane.b32.xlu0 %v172, 104
    %v241 = vpop.permute.xlu0 %240
    %244 = vrot.lane.b32.xlu0 %v169, 8
    %v245 = vpop.permute.xlu0 %244
    %246 = vrot.lane.b32.xlu0 %v172, 8
    %v247 = vpop.permute.xlu0 %246
    %vm250 = vcmask 64512
    %v251 = vsel %vm250, %v239, %v245
    %v252 = vsel %vm250, %v241, %v247
    %v253 = vsub.f32 0.0, %v236
    %v254 = vsub.f32 0.0, %v237
    %v255 = vsel %vm220, 1, 0
    %vm256 = vcmp.eq.s32.totalorder %v255, 1
    %v257 = vsel %vm256, %v253, %v251
    %v258 = vsel %vm256, %v254, %v252
    %261 = vrot.lane.b32.xlu0 %v202, 16
    %v262 = vpop.permute.xlu0 %261
    %263 = vrot.lane.b32.xlu0 %v203, 16
    %v264 = vpop.permute.xlu0 %263
    %vm267 = vcmask 130048
    %v268 = vsel %vm267, %v202, %v262
    %v269 = vsel %vm267, %v203, %v264
    %272 = vrot.lane.b32.xlu0 %v204, 16
    %v273 = vpop.permute.xlu0 %272
    %274 = vrot.lane.b32.xlu0 %v205, 16
    %v275 = vpop.permute.xlu0 %274
    %v278 = vsel %vm267, %v204, %v273
    %v279 = vsel %vm267, %v205, %v275
    %v280 = vmul.f32 %v169, %v268
    %v281 = vmul.f32 %v172, %v269
    %v282 = vmul.f32 %v257, %v278
    %v283 = vmul.f32 %v258, %v279
    %v284 = vadd.f32 %v280, %v282
    %v285 = vadd.f32 %v281, %v283
    %v286 = vpack.c.bf16 %v285, %v284
    %v288 = vunpack.c.l.b16 %v286
    %v289 = vunpack.c.h.b16 %v286
    %v290 = vpack.c.b16 %v288, %v288
    %v291 = vpack.c.b16 %v289, %v289
    %294 = vst.msk [vmem:[#allocation14] sm:$0xf] %vm183, %v290
    %295 = vst.msk [vmem:[#allocation14 + $0x4] sm:$0xf] %vm183, %v291
    %296 = vrot.lane.b32.xlu0 %v169, 88
    %v297 = vpop.permute.xlu0 %296
    %298 = vrot.lane.b32.xlu0 %v172, 88
    %v299 = vpop.permute.xlu0 %298
    %v302 = vsel %vm235, %v297, %v224
    %v303 = vsel %vm235, %v299, %v226
    %304 = vrot.lane.b32.xlu0 %v169, 72
    %v305 = vpop.permute.xlu0 %304
    %306 = vrot.lane.b32.xlu0 %v172, 72
    %v307 = vpop.permute.xlu0 %306
    %v310 = vsel %vm250, %v305, %v239
    %v311 = vsel %vm250, %v307, %v241
    %v312 = vsub.f32 0.0, %v302
    %v313 = vsub.f32 0.0, %v303
    %v314 = vsel %vm256, %v312, %v310
    %v315 = vsel %vm256, %v313, %v311
    %318 = vrot.lane.b32.xlu0 %v268, 32
    %v319 = vpop.permute.xlu0 %318
    %320 = vrot.lane.b32.xlu0 %v269, 32
    %v321 = vpop.permute.xlu0 %320
    %v324 = vmul.f32 %v169, %v319
    %v325 = vmul.f32 %v172, %v321
    %v326 = vmul.f32 %v314, %v278
    %v327 = vmul.f32 %v315, %v279
    %330 = vrot.lane.b32.xlu0 %v326, 32
    %v331 = vpop.permute.xlu0 %330
    %332 = vrot.lane.b32.xlu0 %v327, 32
    %v333 = vpop.permute.xlu0 %332
    %v336 = vadd.f32 %v324, %v331
    %v337 = vadd.f32 %v325, %v333
    %v338 = vpack.c.bf16 %v337, %v336
    %v340 = vunpack.c.l.b16 %v338
    %v341 = vunpack.c.h.b16 %v338
    %v342 = vpack.c.b16 %v340, %v340
    %v343 = vpack.c.b16 %v341, %v341
    %344 = vrot.lane.b32.xlu0 %v342, 96
    %v345 = vpop.permute.xlu0 %344
    %346 = vrot.lane.b32.xlu0 %v343, 96
    %v347 = vpop.permute.xlu0 %346
    %350 = vst.msk [vmem:[#allocation16] sm:$0xf] %vm183, %v345
    %351 = vst.msk [vmem:[#allocation16 + $0x4] sm:$0xf] %vm183, %v347
    // Predicated region
    $region38: #{tpu_custom_call.1} parent=1 // pred_check
      _
    $region39: #{tpu_custom_call.1} parent=1 // pred_check_branch
      %353 = sbr.rel (0) target = $region41
    $region40: #{tpu_custom_call.1} parent=1 // pred_region
      %s355 = ssub.s32 128, 128
      %356 = vsyncadd [#allocation4], %s355
      %s357 = sshll.u32 [#allocation10], 4
      %s358 = int_to_ptr.vmem [resolvable:$true] %s357
      %363 = dma.vmem_to_hbm [thread:$0]  %s358, 128, %s5, [#allocation4], 64, 64, 4
    $region41: #{tpu_custom_call.1} parent=1 // pred_fallthru
      _
    // Predicated region
    $region42: #{tpu_custom_call.1} parent=1 // pred_check
      _
    $region43: #{tpu_custom_call.1} parent=1 // pred_check_branch
      %365 = sbr.rel (0) target = $region45
    $region44: #{tpu_custom_call.1} parent=1 // pred_region
      %s367 = ssub.s32 128, 128
      %368 = vsyncadd [#allocation12], %s367
      %s369 = sshll.u32 [#allocation11], 4
      %s370 = int_to_ptr.vmem [resolvable:$true] %s369
      %375 = dma.vmem_to_hbm [thread:$0]  %s370, 128, %s6, [#allocation12], 64, 64, 4
    $region45: #{tpu_custom_call.1} parent=1 // pred_fallthru
      _
    // Predicated region
    $region46: #{tpu_custom_call.1} parent=1 // pred_check
      _
    $region47: #{tpu_custom_call.1} parent=1 // pred_check_branch
      %377 = sbr.rel (0) target = $region49
    $region48: #{tpu_custom_call.1} parent=1 // pred_region
      %s379 = ssub.s32 128, 128
      %380 = vsyncadd [#allocation12], %s379
      %s381 = sshll.u32 [#allocation13], 4
      %s382 = int_to_ptr.vmem [resolvable:$true] %s381
      %387 = dma.vmem_to_hbm [thread:$0]  %s382, 128, %s7, [#allocation12], 64, 64, 4
    $region49: #{tpu_custom_call.1} parent=1 // pred_fallthru
      _
    // Predicated region
    $region50: #{tpu_custom_call.1} parent=1 // pred_check
      _
    $region51: #{tpu_custom_call.1} parent=1 // pred_check_branch
      %389 = sbr.rel (0) target = $region53
    $region52: #{tpu_custom_call.1} parent=1 // pred_region
      %s391 = ssub.s32 128, 128
      %392 = vsyncadd [#allocation15], %s391
      %s393 = sshll.u32 [#allocation14], 4
      %s394 = int_to_ptr.vmem [resolvable:$true] %s393
      %399 = dma.vmem_to_hbm [thread:$0]  %s394, 128, %s8, [#allocation15], 64, 64, 4
    $region53: #{tpu_custom_call.1} parent=1 // pred_fallthru
      _
    // Predicated region
    $region54: #{tpu_custom_call.1} parent=1 // pred_check
      _
    $region55: #{tpu_custom_call.1} parent=1 // pred_check_branch
      %401 = sbr.rel (0) target = $region57
    $region56: #{tpu_custom_call.1} parent=1 // pred_region
      %s403 = ssub.s32 128, 128
      %404 = vsyncadd [#allocation15], %s403
      %s405 = sshll.u32 [#allocation16], 4
      %s406 = int_to_ptr.vmem [resolvable:$true] %s405
      %411 = dma.vmem_to_hbm [thread:$0]  %s406, 128, %s9, [#allocation15], 64, 64, 4
    $region57: #{tpu_custom_call.1} parent=1 // pred_fallthru
      _
    // Predicated region
    $region58: #{tpu_custom_call.1} parent=1 // pred_check
      _
    $region59: #{tpu_custom_call.1} parent=1 // pred_check_branch
      %413 = sbr.rel (0) target = $region61
    $region60: #{tpu_custom_call.1} parent=1 // pred_region
      %414 = dma.done [#allocation4], 128
    $region61: #{tpu_custom_call.1} parent=1 // pred_fallthru
      _
    // Predicated region
    $region62: #{tpu_custom_call.1} parent=1 // pred_check
      _
    $region63: #{tpu_custom_call.1} parent=1 // pred_check_branch
      %416 = sbr.rel (0) target = $region65
    $region64: #{tpu_custom_call.1} parent=1 // pred_region
      %417 = dma.done [#allocation12], 128
    $region65: #{tpu_custom_call.1} parent=1 // pred_fallthru
      _
    // Predicated region
    $region66: #{tpu_custom_call.1} parent=1 // pred_check
      _
    $region67: #{tpu_custom_call.1} parent=1 // pred_check_branch
      %419 = sbr.rel (0) target = $region69
    $region68: #{tpu_custom_call.1} parent=1 // pred_region
      %420 = dma.done [#allocation12], 128
    $region69: #{tpu_custom_call.1} parent=1 // pred_fallthru
      _
    // Predicated region
    $region70: #{tpu_custom_call.1} parent=1 // pred_check
      _
    $region71: #{tpu_custom_call.1} parent=1 // pred_check_branch
      %422 = sbr.rel (0) target = $region73
    $region72: #{tpu_custom_call.1} parent=1 // pred_region
      %423 = dma.done [#allocation15], 128
    $region73: #{tpu_custom_call.1} parent=1 // pred_fallthru
      _
    // Predicated region
    $region74: #{tpu_custom_call.1} parent=1 // pred_check
      _
    $region75: #{tpu_custom_call.1} parent=1 // pred_check_branch
      %425 = sbr.rel (0) target = $region77
    $region76: #{tpu_custom_call.1} parent=1 // pred_region
      %426 = dma.done [#allocation15], 128
    $region77: #{tpu_custom_call.1} parent=1 // pred_fallthru
      _
    %427 = vsyncpa [#allocation3], 1
    %428 = vsyncpa [#allocation6], 1
    %429 = vsyncpa [#allocation9], 1
    %430 = vsyncpa [#allocation4], 1
    %431 = vsyncpa [#allocation12], 1
    %432 = vsyncpa [#allocation15], 1

// kernel: tpu_custom_call.1
$region0: #{tpu_custom_call.1}
  #allocation0 [shape = 'u32[]', space=smem, size = 0x4, offset = 0x4, fixed_abs, tag = 'smem constant byte address 0x4 - core index']
  #allocation1 [shape = 'u32[144,128]{1,0:T(1,128)}', space=vmem, size = 0x12000, scoped, tag = 'internal scratch']
  %s0 = inlined_call_operand.hbm [shape: f32[16,32], index: 0, kind: input, shape index: {}]
  %s1 = inlined_call_operand.vmem [shape: f32[1,32], index: 1, kind: input, shape index: {}]
  %s2 = inlined_call_operand.hbm [shape: bf16[32,96], index: 2, kind: input, shape index: {}]
  %s3 = inlined_call_operand.hbm [shape: f32[16,16], index: 3, kind: input, shape index: {}]
  %s4 = inlined_call_operand.hbm [shape: f32[16,16], index: 4, kind: input, shape index: {}]
  %s5 = inlined_call_operand.hbm [shape: bf16[16,32], index: 5, kind: output, shape index: {0}]
  %s6 = inlined_call_operand.hbm [shape: bf16[16,32], index: 6, kind: output, shape index: {1}]
  %s7 = inlined_call_operand.hbm [shape: bf16[16,32], index: 7, kind: output, shape index: {2}]
  %s8 = inlined_call_operand.hbm [shape: bf16[16,32], index: 8, kind: output, shape index: {3}]
  %s9 = inlined_call_operand.hbm [shape: bf16[16,32], index: 9, kind: output, shape index: {4}]
  %10 = xla_tuple %s5, %s6, %s7, %s8, %s9
  %s11 = sld [smem:[#allocation0]]
  $region78: #{tpu_custom_call.1} parent=0
    _
  %s13 = ssub.s32 1, %s11
  %s14 = scalar_select 0, %s13, %s11
  $region1: #{tpu_custom_call.1} parent=0
    #allocation2 [shape = 'u8[8192]{0}', space=vmem, size = 0x2000, scoped, tag = 'input window, operand 0, single buffered']
    #allocation3 [shape = 's32[1]{0}', space=sflag, size = 0x4, scoped, tag = 'scoped memory for tpu_custom_call.1']
    #allocation4 [shape = 's32[1]{0}', space=sflag, size = 0x4, scoped, tag = 'scoped memory for tpu_custom_call.1']
    #allocation5 [shape = 'u8[8192]{0}', space=vmem, size = 0x2000, scoped, tag = 'input window, operand 2, single buffered']
    #allocation6 [shape = 's32[1]{0}', space=sflag, size = 0x4, scoped, tag = 'scoped memory for tpu_custom_call.1']
    #allocation7 [shape = 'u8[8192]{0}', space=vmem, size = 0x2000, scoped, tag = 'input window, operand 3, single buffered']
    #allocation8 [shape = 'u8[8192]{0}', space=vmem, size = 0x2000, scoped, tag = 'input window, operand 4, single buffered']
    #allocation9 [shape = 's32[1]{0}', space=sflag, size = 0x4, scoped, tag = 'scoped memory for tpu_custom_call.1']
    #allocation10 [shape = 'u8[4096]{0}', space=vmem, size = 0x1000, scoped, tag = 'output window, operand 0, single buffered']
    #allocation11 [shape = 'u8[4096]{0}', space=vmem, size = 0x1000, scoped, tag = 'output window, operand 1, single buffered']
    #allocation12 [shape = 's32[1]{0}', space=sflag, size = 0x4, scoped, tag = 'scoped memory for tpu_custom_call.1']
    #allocation13 [shape = 'u8[4096]{0}', space=vmem, size = 0x1000, scoped, tag = 'output window, operand 2, single buffered']
    #allocation14 [shape = 'u8[4096]{0}', space=vmem, size = 0x1000, scoped, tag = 'output window, operand 3, single buffered']
    #allocation15 [shape = 's32[1]{0}', space=sflag, size = 0x4, scoped, tag = 'scoped memory for tpu_custom_call.1']
    #allocation16 [shape = 'u8[4096]{0}', space=vmem, size = 0x1000, scoped, tag = 'output window, operand 4, single buffered']
    %15 = vsyncpa [#allocation3], 0
    %16 = vsyncpa [#allocation6], 0
    %17 = vsyncpa [#allocation9], 0
    %18 = vsyncpa [#allocation4], 0
    %19 = vsyncpa [#allocation12], 0
    %20 = vsyncpa [#allocation15], 0
    // Predicated region
    $region2: #{tpu_custom_call.1} parent=1 // pred_check
      _
    $region3: #{tpu_custom_call.1} parent=1 // pred_check_branch
      %22 = sbr.rel (0) target = $region5
    $region4: #{tpu_custom_call.1} parent=1 // pred_region
      %s24 = ssub.s32 256, 256
      %25 = vsyncadd [#allocation3], %s24
      %s26 = sshll.u32 [#allocation2], 4
      %s27 = int_to_ptr.vmem [resolvable:$true] %s26
      %32 = dma.hbm_to_vmem [thread:$0]  %s0, 256, %s27, [#allocation3], 128, 128, 8
    $region5: #{tpu_custom_call.1} parent=1 // pred_fallthru
      _
    // Predicated region
    $region6: #{tpu_custom_call.1} parent=1 // pred_check
      _
    $region7: #{tpu_custom_call.1} parent=1 // pred_check_branch
      %34 = sbr.rel (0) target = $region9
    $region8: #{tpu_custom_call.1} parent=1 // pred_region
      _
    $region9: #{tpu_custom_call.1} parent=1 // pred_fallthru
      _
    // Predicated region
    $region10: #{tpu_custom_call.1} parent=1 // pred_check
      _
    $region11: #{tpu_custom_call.1} parent=1 // pred_check_branch
      %36 = sbr.rel (0) target = $region13
    $region12: #{tpu_custom_call.1} parent=1 // pred_region
      %s38 = ssub.s32 256, 256
      %39 = vsyncadd [#allocation6], %s38
      %s40 = sshll.u32 [#allocation5], 4
      %s41 = int_to_ptr.vmem [resolvable:$true] %s40
      %46 = dma.hbm_to_vmem [thread:$0]  %s2, 256, %s41, [#allocation6], 64, 64, 4
    $region13: #{tpu_custom_call.1} parent=1 // pred_fallthru
      _
    // Predicated region
    $region14: #{tpu_custom_call.1} parent=1 // pred_check
      _
    $region15: #{tpu_custom_call.1} parent=1 // pred_check_branch
      %48 = sbr.rel (0) target = $region17
    $region16: #{tpu_custom_call.1} parent=1 // pred_region
      %s50 = ssub.s32 256, 256
      %51 = vsyncadd [#allocation6], %s50
      %s52 = sshll.u32 [#allocation7], 4
      %s53 = int_to_ptr.vmem [resolvable:$true] %s52
      %58 = dma.hbm_to_vmem [thread:$0]  %s3, 256, %s53, [#allocation6], 128, 128, 8
    $region17: #{tpu_custom_call.1} parent=1 // pred_fallthru
      _
    // Predicated region
    $region18: #{tpu_custom_call.1} parent=1 // pred_check
      _
    $region19: #{tpu_custom_call.1} parent=1 // pred_check_branch
      %60 = sbr.rel (0) target = $region21
    $region20: #{tpu_custom_call.1} parent=1 // pred_region
      %s62 = ssub.s32 256, 256
      %63 = vsyncadd [#allocation9], %s62
      %s64 = sshll.u32 [#allocation8], 4
      %s65 = int_to_ptr.vmem [resolvable:$true] %s64
      %70 = dma.hbm_to_vmem [thread:$0]  %s4, 256, %s65, [#allocation9], 128, 128, 8
    $region21: #{tpu_custom_call.1} parent=1 // pred_fallthru
      _
    // Predicated region
    $region22: #{tpu_custom_call.1} parent=1 // pred_check
      _
    $region23: #{tpu_custom_call.1} parent=1 // pred_check_branch
      %72 = sbr.rel (0) target = $region25
    $region24: #{tpu_custom_call.1} parent=1 // pred_region
      %73 = dma.done [#allocation3], 256
    $region25: #{tpu_custom_call.1} parent=1 // pred_fallthru
      _
    // Predicated region
    $region26: #{tpu_custom_call.1} parent=1 // pred_check
      _
    $region27: #{tpu_custom_call.1} parent=1 // pred_check_branch
      %75 = sbr.rel (0) target = $region29
    $region28: #{tpu_custom_call.1} parent=1 // pred_region
      %76 = dma.done [#allocation6], 256
    $region29: #{tpu_custom_call.1} parent=1 // pred_fallthru
      _
    // Predicated region
    $region30: #{tpu_custom_call.1} parent=1 // pred_check
      _
    $region31: #{tpu_custom_call.1} parent=1 // pred_check_branch
      %78 = sbr.rel (0) target = $region33
    $region32: #{tpu_custom_call.1} parent=1 // pred_region
      %79 = dma.done [#allocation6], 256
    $region33: #{tpu_custom_call.1} parent=1 // pred_fallthru
      _
    // Predicated region
    $region34: #{tpu_custom_call.1} parent=1 // pred_check
      _
    $region35: #{tpu_custom_call.1} parent=1 // pred_check_branch
      %81 = sbr.rel (0) target = $region37
    $region36: #{tpu_custom_call.1} parent=1 // pred_region
      %82 = dma.done [#allocation9], 256
    $region37: #{tpu_custom_call.1} parent=1 // pred_fallthru
      _
    %v84 = vld [vmem:[#allocation2] sm:$0xff]
    %v85 = vld [vmem:[#allocation2 + $0x8] sm:$0xff]
    %v86 = vmul.f32 %v84, %v84
    %v87 = vmul.f32 %v85, %v85
    %vm88 = vcmask 261120
    %v89 = vsel %vm88, %v86, 0.0
    %90 = vadd.xlane.f32.xlu0 %v89
    %v91 = vpop.xlane.xlu0 %90
    %v92 = vsel %vm88, %v87, 0.0
    %93 = vadd.xlane.f32.xlu0 %v92
    %v94 = vpop.xlane.xlu0 %93
    %v95 = vrcp.pop 32.0
    %v96 = vmul.f32 %v91, %v95
    %v97 = vmul.f32 %v94, %v95
    %v98 = vadd.f32 %v96, 1e-06
    %v99 = vadd.f32 %v97, 1e-06
    %v100 = vrsqrt.pop %v98
    %v101 = vrsqrt.pop %v99
    %v102 = vmul.f32 %v84, %v100
    %v103 = vmul.f32 %v85, %v101
    %v104 = vld [vmem:[%s1] sm:$0x1]
    %v105 = vadd.f32 %v104, 1.0
    %v107 = vlaneseq
    %v108 = vshrl.u32 %v107, 7
    %v109 = vsub.s32 0, %v108
    %v110 = vrot.slane %v105, %v109
    %v112 = vmul.f32 %v102, %v110
    %v113 = vmul.f32 %v103, %v110
    %v114 = vpack.c.bf16 %v113, %v112
    %v115 = vld [vmem:[#allocation5] sm:$0xf]
    %v116 = vld [vmem:[#allocation5 + $0x4] sm:$0xf]
    %v117 = vld [vmem:[#allocation5 + $0x8] sm:$0xf]
    %v118 = vld [vmem:[#allocation5 + $0xc] sm:$0xf]
    %v123 = vunpack.c.l.b16 %v115
    %v124 = vunpack.c.l.b16 %v116
    %v125 = vunpack.c.l.b16 %v117
    %v126 = vunpack.c.l.b16 %v118
    %v127 = vpack.c.b16 %v124, %v123
    %v128 = vpack.c.b16 %v126, %v125
    %v132 = vsel %vm88, %v114, 0
    %134 = vmatprep.subr.bf16.mxu0 0
    %135 = vmatpush1.bf16.msra.mxu0 %v127
    %136 = vmatprep.subr.bf16.mxu0 0
    %137 = vmatpush1.bf16.msra.mxu0 %v128
    %138 = vmatprep.subr.bf16.mxu0 0
    %139 = vmatpush1.bf16.msra.mxu0 0
    %140 = vmatprep.subr.bf16.mxu0 0
    %141 = vmatpush1.bf16.msra.mxu0 0
    %142 = vmatprep.subr.bf16.mxu0 0
    %143 = vmatpush1.bf16.msra.mxu0 0
    %144 = vmatprep.subr.bf16.mxu0 0
    %145 = vmatpush1.bf16.msra.mxu0 0
    %146 = vmatprep.subr.bf16.mxu0 0
    %147 = vmatpush1.bf16.msra.mxu0 0
    %148 = vmatprep.subr.bf16.mxu0 0
    %149 = vmatpush1.bf16.msra.mxu0 0
    %150 = vmatprep.subr.bf16.mxu0 0
    %151 = vmatpush1.bf16.msra.mxu0 0
    %152 = vmatprep.subr.bf16.mxu0 0
    %153 = vmatpush1.bf16.msra.mxu0 0
    %154 = vmatprep.subr.bf16.mxu0 0
    %155 = vmatpush1.bf16.msra.mxu0 0
    %156 = vmatprep.subr.bf16.mxu0 0
    %157 = vmatpush1.bf16.msra.mxu0 0
    %158 = vmatprep.subr.bf16.mxu0 0
    %159 = vmatpush1.bf16.msra.mxu0 0
    %160 = vmatprep.subr.bf16.mxu0 0
    %161 = vmatpush1.bf16.msra.mxu0 0
    %162 = vmatprep.subr.bf16.mxu0 0
    %163 = vmatpush1.bf16.msra.mxu0 0
    %164 = vmatprep.subr.bf16.mxu0 0
    %165 = vmatpush1.bf16.msra.mxu0 0
    %166 = vmatprep.mubr.bf16.mxu0 0
    %167 = vmatmul.mubr.bf16.gmra.mrb[0].mxu0 %v132
    %v168 = vpop.f32.mrb[0].mxu0
    %v169 = vadd.f32 0.0, %v168
    %v170 = vpop.f32.mrb[0].mxu0
    %v171 = vpop.f32.mrb[0].mxu0
    %v172 = vadd.f32 0.0, %v171
    %v173 = vpop.f32.mrb[0].mxu0
    %174 = vdwg.mxu0
    %v175 = vpack.c.bf16 %v172, %v169
    %v177 = vunpack.c.l.b16 %v175
    %v178 = vunpack.c.h.b16 %v175
    %v179 = vpack.c.b16 %v177, %v177
    %v180 = vpack.c.b16 %v178, %v178
    %vm183 = vcmask 257024
    %184 = vst.msk [vmem:[#allocation10] sm:$0xf] %vm183, %v179
    %185 = vst.msk [vmem:[#allocation10 + $0x4] sm:$0xf] %vm183, %v180
    %186 = vrot.lane.b32.xlu0 %v179, 96
    %v187 = vpop.permute.xlu0 %186
    %188 = vrot.lane.b32.xlu0 %v180, 96
    %v189 = vpop.permute.xlu0 %188
    %192 = vst.msk [vmem:[#allocation11] sm:$0xf] %vm183, %v187
    %193 = vst.msk [vmem:[#allocation11 + $0x4] sm:$0xf] %vm183, %v189
    %194 = vrot.lane.b32.xlu0 %v179, 64
    %v195 = vpop.permute.xlu0 %194
    %196 = vrot.lane.b32.xlu0 %v180, 64
    %v197 = vpop.permute.xlu0 %196
    %200 = vst.msk [vmem:[#allocation13] sm:$0xf] %vm183, %v195
    %201 = vst.msk [vmem:[#allocation13 + $0x4] sm:$0xf] %vm183, %v197
    %v202 = vld [vmem:[#allocation7] sm:$0xff]
    %v203 = vld [vmem:[#allocation7 + $0x8] sm:$0xff]
    %v204 = vld [vmem:[#allocation8] sm:$0xff]
    %v205 = vld [vmem:[#allocation8 + $0x8] sm:$0xff]
    %v206 = vlaneseq
    %v207 = vand.u32 %v206, 127
    %vm208 = vcmp.lt.s32.totalorder %v207, 0
    %v209 = vsub.s32 0, %v207
    %v210 = vsel %vm208, %v209, %v207
    %v211 = vshrl.u32 %v210, 4
    %v212 = vand.u32 %v210, 15
    %v213 = vsub.s32 0, %v212
    %v214 = vsel %vm208, %v213, %v212
    %vm215 = vcmp.ne.s32.totalorder %v214, 0
    %vm216 = vcmp.lt.s32.totalorder %v214, 0
    %vm217 = vmand %vm216, %vm215
    %v218 = vadd.s32 %v214, 16
    %v219 = vsel %vm217, %v218, %v214
    %vm220 = vcmp.lt.s32.totalorder %v219, 8
    %223 = vrot.lane.b32.xlu0 %v169, 120
    %v224 = vpop.permute.xlu0 %223
    %225 = vrot.lane.b32.xlu0 %v172, 120
    %v226 = vpop.permute.xlu0 %225
    %229 = vrot.lane.b32.xlu0 %v169, 24
    %v230 = vpop.permute.xlu0 %229
    %231 = vrot.lane.b32.xlu0 %v172, 24
    %v232 = vpop.permute.xlu0 %231
    %vm235 = vcmask 195584
    %v236 = vsel %vm235, %v224, %v230
    %v237 = vsel %vm235, %v226, %v232
    %238 = vrot.lane.b32.xlu0 %v169, 104
    %v239 = vpop.permute.xlu0 %238
    %240 = vrot.lane.b32.xlu0 %v172, 104
    %v241 = vpop.permute.xlu0 %240
    %244 = vrot.lane.b32.xlu0 %v169, 8
    %v245 = vpop.permute.xlu0 %244
    %246 = vrot.lane.b32.xlu0 %v172, 8
    %v247 = vpop.permute.xlu0 %246
    %vm250 = vcmask 64512
    %v251 = vsel %vm250, %v239, %v245
    %v252 = vsel %vm250, %v241, %v247
    %v253 = vsub.f32 0.0, %v236
    %v254 = vsub.f32 0.0, %v237
    %v255 = vsel %vm220, 1, 0
    %vm256 = vcmp.eq.s32.totalorder %v255, 1
    %v257 = vsel %vm256, %v253, %v251
    %v258 = vsel %vm256, %v254, %v252
    %261 = vrot.lane.b32.xlu0 %v202, 16
    %v262 = vpop.permute.xlu0 %261
    %263 = vrot.lane.b32.xlu0 %v203, 16
    %v264 = vpop.permute.xlu0 %263
    %vm267 = vcmask 130048
    %v268 = vsel %vm267, %v202, %v262
    %v269 = vsel %vm267, %v203, %v264
    %272 = vrot.lane.b32.xlu0 %v204, 16
    %v273 = vpop.permute.xlu0 %272
    %274 = vrot.lane.b32.xlu0 %v205, 16
    %v275 = vpop.permute.xlu0 %274
    %v278 = vsel %vm267, %v204, %v273
    %v279 = vsel %vm267, %v205, %v275
    %v280 = vmul.f32 %v169, %v268
    %v281 = vmul.f32 %v172, %v269
    %v282 = vmul.f32 %v257, %v278
    %v283 = vmul.f32 %v258, %v279
    %v284 = vadd.f32 %v280, %v282
    %v285 = vadd.f32 %v281, %v283
    %v286 = vpack.c.bf16 %v285, %v284
    %v288 = vunpack.c.l.b16 %v286
    %v289 = vunpack.c.h.b16 %v286
    %v290 = vpack.c.b16 %v288, %v288
    %v291 = vpack.c.b16 %v289, %v289
    %294 = vst.msk [vmem:[#allocation14] sm:$0xf] %vm183, %v290
    %295 = vst.msk [vmem:[#allocation14 + $0x4] sm:$0xf] %vm183, %v291
    %296 = vrot.lane.b32.xlu0 %v169, 88
    %v297 = vpop.permute.xlu0 %296
    %298 = vrot.lane.b32.xlu0 %v172, 88
    %v299 = vpop.permute.xlu0 %298
    %v302 = vsel %vm235, %v297, %v224
    %v303 = vsel %vm235, %v299, %v226
    %304 = vrot.lane.b32.xlu0 %v169, 72
    %v305 = vpop.permute.xlu0 %304
    %306 = vrot.lane.b32.xlu0 %v172, 72
    %v307 = vpop.permute.xlu0 %306
    %v310 = vsel %vm250, %v305, %v239
    %v311 = vsel %vm250, %v307, %v241
    %v312 = vsub.f32 0.0, %v302
    %v313 = vsub.f32 0.0, %v303
    %v314 = vsel %vm256, %v312, %v310
    %v315 = vsel %vm256, %v313, %v311
    %318 = vrot.lane.b32.xlu0 %v268, 32
    %v319 = vpop.permute.xlu0 %318
    %320 = vrot.lane.b32.xlu0 %v269, 32
    %v321 = vpop.permute.xlu0 %320
    %v324 = vmul.f32 %v169, %v319
    %v325 = vmul.f32 %v172, %v321
    %v326 = vmul.f32 %v314, %v278
    %v327 = vmul.f32 %v315, %v279
    %330 = vrot.lane.b32.xlu0 %v326, 32
    %v331 = vpop.permute.xlu0 %330
    %332 = vrot.lane.b32.xlu0 %v327, 32
    %v333 = vpop.permute.xlu0 %332
    %v336 = vadd.f32 %v324, %v331
    %v337 = vadd.f32 %v325, %v333
    %v338 = vpack.c.bf16 %v337, %v336
    %v340 = vunpack.c.l.b16 %v338
    %v341 = vunpack.c.h.b16 %v338
    %v342 = vpack.c.b16 %v340, %v340
    %v343 = vpack.c.b16 %v341, %v341
    %344 = vrot.lane.b32.xlu0 %v342, 96
    %v345 = vpop.permute.xlu0 %344
    %346 = vrot.lane.b32.xlu0 %v343, 96
    %v347 = vpop.permute.xlu0 %346
    %350 = vst.msk [vmem:[#allocation16] sm:$0xf] %vm183, %v345
    %351 = vst.msk [vmem:[#allocation16 + $0x4] sm:$0xf] %vm183, %v347
    // Predicated region
    $region38: #{tpu_custom_call.1} parent=1 // pred_check
      _
    $region39: #{tpu_custom_call.1} parent=1 // pred_check_branch
      %353 = sbr.rel (0) target = $region41
    $region40: #{tpu_custom_call.1} parent=1 // pred_region
      %s355 = ssub.s32 128, 128
      %356 = vsyncadd [#allocation4], %s355
      %s357 = sshll.u32 [#allocation10], 4
      %s358 = int_to_ptr.vmem [resolvable:$true] %s357
      %363 = dma.vmem_to_hbm [thread:$0]  %s358, 128, %s5, [#allocation4], 64, 64, 4
    $region41: #{tpu_custom_call.1} parent=1 // pred_fallthru
      _
    // Predicated region
    $region42: #{tpu_custom_call.1} parent=1 // pred_check
      _
    $region43: #{tpu_custom_call.1} parent=1 // pred_check_branch
      %365 = sbr.rel (0) target = $region45
    $region44: #{tpu_custom_call.1} parent=1 // pred_region
      %s367 = ssub.s32 128, 128
      %368 = vsyncadd [#allocation12], %s367
      %s369 = sshll.u32 [#allocation11], 4
      %s370 = int_to_ptr.vmem [resolvable:$true] %s369
      %375 = dma.vmem_to_hbm [thread:$0]  %s370, 128, %s6, [#allocation12], 64, 64, 4
    $region45: #{tpu_custom_call.1} parent=1 // pred_fallthru
      _
    // Predicated region
    $region46: #{tpu_custom_call.1} parent=1 // pred_check
      _
    $region47: #{tpu_custom_call.1} parent=1 // pred_check_branch
      %377 = sbr.rel (0) target = $region49
    $region48: #{tpu_custom_call.1} parent=1 // pred_region
      %s379 = ssub.s32 128, 128
      %380 = vsyncadd [#allocation12], %s379
      %s381 = sshll.u32 [#allocation13], 4
      %s382 = int_to_ptr.vmem [resolvable:$true] %s381
      %387 = dma.vmem_to_hbm [thread:$0]  %s382, 128, %s7, [#allocation12], 64, 64, 4
    $region49: #{tpu_custom_call.1} parent=1 // pred_fallthru
      _
    // Predicated region
    $region50: #{tpu_custom_call.1} parent=1 // pred_check
      _
    $region51: #{tpu_custom_call.1} parent=1 // pred_check_branch
      %389 = sbr.rel (0) target = $region53
    $region52: #{tpu_custom_call.1} parent=1 // pred_region
      %s391 = ssub.s32 128, 128
      %392 = vsyncadd [#allocation15], %s391
      %s393 = sshll.u32 [#allocation14], 4
      %s394 = int_to_ptr.vmem [resolvable:$true] %s393
      %399 = dma.vmem_to_hbm [thread:$0]  %s394, 128, %s8, [#allocation15], 64, 64, 4
    $region53: #{tpu_custom_call.1} parent=1 // pred_fallthru
      _
    // Predicated region
    $region54: #{tpu_custom_call.1} parent=1 // pred_check
      _
    $region55: #{tpu_custom_call.1} parent=1 // pred_check_branch
      %401 = sbr.rel (0) target = $region57
    $region56: #{tpu_custom_call.1} parent=1 // pred_region
      %s403 = ssub.s32 128, 128
      %404 = vsyncadd [#allocation15], %s403
      %s405 = sshll.u32 [#allocation16], 4
      %s406 = int_to_ptr.vmem [resolvable:$true] %s405
      %411 = dma.vmem_to_hbm [thread:$0]  %s406, 128, %s9, [#allocation15], 64, 64, 4
    $region57: #{tpu_custom_call.1} parent=1 // pred_fallthru
      _
    // Predicated region
    $region58: #{tpu_custom_call.1} parent=1 // pred_check
      _
    $region59: #{tpu_custom_call.1} parent=1 // pred_check_branch
      %413 = sbr.rel (0) target = $region61
    $region60: #{tpu_custom_call.1} parent=1 // pred_region
      %414 = dma.done [#allocation4], 128
    $region61: #{tpu_custom_call.1} parent=1 // pred_fallthru
      _
    // Predicated region
    $region62: #{tpu_custom_call.1} parent=1 // pred_check
      _
    $region63: #{tpu_custom_call.1} parent=1 // pred_check_branch
      %416 = sbr.rel (0) target = $region65
    $region64: #{tpu_custom_call.1} parent=1 // pred_region
      %417 = dma.done [#allocation12], 128
    $region65: #{tpu_custom_call.1} parent=1 // pred_fallthru
      _
    // Predicated region
    $region66: #{tpu_custom_call.1} parent=1 // pred_check
      _
    $region67: #{tpu_custom_call.1} parent=1 // pred_check_branch
      %419 = sbr.rel (0) target = $region69
    $region68: #{tpu_custom_call.1} parent=1 // pred_region
      %420 = dma.done [#allocation12], 128
    $region69: #{tpu_custom_call.1} parent=1 // pred_fallthru
      _
    // Predicated region
    $region70: #{tpu_custom_call.1} parent=1 // pred_check
      _
    $region71: #{tpu_custom_call.1} parent=1 // pred_check_branch
      %422 = sbr.rel (0) target = $region73
    $region72: #{tpu_custom_call.1} parent=1 // pred_region
      %423 = dma.done [#allocation15], 128
    $region73: #{tpu_custom_call.1} parent=1 // pred_fallthru
      _
    // Predicated region
    $region74: #{tpu_custom_call.1} parent=1 // pred_check
      _
    $region75: #{tpu_custom_call.1} parent=1 // pred_check_branch
      %425 = sbr.rel (0) target = $region77
    $region76: #{tpu_custom_call.1} parent=1 // pred_region
      %426 = dma.done [#allocation15], 128
    $region77: #{tpu_custom_call.1} parent=1 // pred_fallthru
      _
    %427 = vsyncpa [#allocation3], 1
    %428 = vsyncpa [#allocation6], 1
    %429 = vsyncpa [#allocation9], 1
    %430 = vsyncpa [#allocation4], 1
    %431 = vsyncpa [#allocation12], 1
    %432 = vsyncpa [#allocation15], 1

</llo_original>
